<compile_context>
chip_gen: v7x
topology: tpu7x:2x2x1
jax: 0.10.0
libtpu: 0.0.40
codegen_flags: <defaults>
</compile_context>

<pallas_src>
import math
import jax
import jax.numpy as jnp
from jax import lax
from jax.experimental import pallas as pl
from jax.experimental.pallas import tpu as pltpu

_SUBLANE = 8


# ----------------------------------------------------------------------------
# Pallas kernel (all layers + head fused)
# ----------------------------------------------------------------------------
def fused_lstm_kernel(x_ref, wih_ref, whh_ref, b_ref, h0_ref, c0_ref,
                      wl_ref, bl_ref, out_ref, seq_a, seq_b):
    """x_ref   : (T, B, G) f32   layer-0 input, features in lanes [0, Din), G = 4H
       wih_ref : (L, G, G) bf16  input->gates, zero-padded (layer 0: rows [0,Din),
                                 layers>0: rows [2H,3H))
       whh_ref : (L, G, G) bf16  hidden->gates, non-zero rows only at [2H,3H)
       b_ref   : (L, 1, G) f32   combined bias (b_ih + b_hh)
       h0_ref  : (L, B, G) f32   initial h, stored in the g slot (lanes [2H,3H))
       c0_ref  : (L, B, G) f32   initial c, stored in the g slot
       wl_ref  : (1, G)    f32   last row of the linear head, stored in the g slot
       bl_ref  : (1, 1)    SMEM  last element of the head bias
       out_ref : (P, B)    f32   predicts[:, -P:, -1], time-major
       scratch : seq_a / seq_b (T, B, G) f32 ping-pong sequence buffers
    """
    T, B, G = x_ref.shape
    H = G // 4
    L = wih_ref.shape[0]
    P = out_ref.shape[0]

    # Lane mask for the "g" gate slot [2H, 3H). Hoisted once (broadcasts are
    # not CSE'd inside loops).
    lane = lax.broadcasted_iota(jnp.int32, (B, G), 1)
    g_mask = (lane >= 2 * H) & (lane < 3 * H)

    src = x_ref
    bufs = (seq_a, seq_b)
    for layer in range(L):                      # static Python loop over layers
        dst = bufs[layer % 2]

        # ---- hoisted input projection: ONE (T*B, G) x (G, G) bf16 MXU matmul.
        # Result goes straight into dst; the time loop reads dst[t] as z_in and
        # overwrites it with h (no separate zbuf scratch).
        xin = src[...].reshape(T * B, G).astype(jnp.bfloat16)
        z_in = jnp.dot(xin, wih_ref[layer],
                       preferred_element_type=jnp.float32) + b_ref[layer]
        dst[...] = z_in.reshape(T, B, G)

        whh_l = whh_ref[layer]                  # (G, G) bf16, resident across the loop

        def step(t, carry, dst=dst, whh_l=whh_l):
            h, c = carry                        # f32, vreg-resident (one vreg each)
            z = dst[t] + jnp.dot(h.astype(jnp.bfloat16), whh_l,
                                 preferred_element_type=jnp.float32)     # (B, G)
            # Single-tanh activation: sigmoid(x) = 0.5*tanh(x/2) + 0.5.
            t1 = jnp.tanh(jnp.where(g_mask, z, 0.5 * z))
            act = jnp.where(g_mask, t1, 0.5 * t1 + 0.5)
            # Align i, f, o with the g slot via lane rotations (XLU, off the VPU path).
            i_g = pltpu.roll(act, shift=2 * H, axis=1)
            f_g = pltpu.roll(act, shift=H, axis=1)
            o_g = pltpu.roll(act, shift=3 * H, axis=1)
            # Mask c to the g slot: non-g lanes stay exactly zero.
            c_new = jnp.where(g_mask, f_g * c + i_g * act, 0.0)
            h_new = o_g * jnp.tanh(c_new)       # non-g lanes: o_g * tanh(0) = 0
            dst[t] = h_new                      # lane/sublane-dense store
            return h_new, c_new

        # h / c as loop carries (vregs); unroll capped so production T doesn't spill.
        lax.fori_loop(0, T, step, (h0_ref[layer], c0_ref[layer]),
                      unroll=min(T, 8))
        src = dst

    # ---- head epilogue: only w_lin[-1] over the last P time steps ----
    tail = src[pl.ds(T - P, P), :, :]           # (P, B, G)
    w = wl_ref[...]                             # (1, G), non-zero only in the g slot
    head = jnp.sum(tail * w[None, :, :], axis=-1)   # (P, B) lane reduce
    out_ref[...] = head + bl_ref[0, 0]
    # TODO(synk): present a lane-dense output layout if pred_len/batch grow.


# ----------------------------------------------------------------------------
# Wrapper
# ----------------------------------------------------------------------------
def _vmem():
    return pl.BlockSpec(memory_space=pltpu.MemorySpace.VMEM)


def _smem():
    return pl.BlockSpec(memory_space=pltpu.MemorySpace.SMEM)


def lstm_model_forward(input_seq, init_base, lstm_params, lin_params, pred_len):
    """input_seq: (B, T, input_size), batch-first (nn.LSTM(batch_first=True)).
       init_base: (h0, c0), each (num_layers, B, H).
       Returns predicts[:, -pred_len:, -1] of shape (B, pred_len)."""
    h0_all, c0_all = init_base
    B, T, Din = input_seq.shape
    L = len(lstm_params)
    H = lstm_params[0][1].shape[1]            # w_hh: (4H, H)
    G = 4 * H
    # TODO(synk): handle input_size > 4*h_size (needs a separate layer-0 W_ih shape).
    assert Din <= G
    assert pred_len <= T, "head reads the last pred_len steps; pred_len must be <= T"
    Bp = max(_SUBLANE, -(-B // _SUBLANE) * _SUBLANE)

    # time-major, pad batch to the sublane width, pad features into the 4H lane space
    x = jnp.transpose(input_seq, (1, 0, 2)).astype(jnp.float32)
    x = jnp.pad(x, ((0, 0), (0, Bp - B), (0, G - Din)))           # (T, Bp, G)

    wih_big, whh_big, bias = [], [], []
    for layer, (w_ih, w_hh, b_ih, b_hh) in enumerate(lstm_params):
        wt = w_ih.T                                               # (Din or H, G)
        row0 = 0 if layer == 0 else 2 * H                         # layers>0 read h from the g slot
        wih_big.append(
            jnp.zeros((G, G), jnp.float32).at[row0:row0 + wt.shape[0], :].set(wt))
        whh_big.append(
            jnp.zeros((G, G), jnp.float32).at[2 * H:3 * H, :].set(w_hh.T))
        bias.append((b_ih + b_hh).reshape(1, G))
    # bf16 MXU operands (single MXU pass); accumulation + state stay f32.
    wih_big = jnp.stack(wih_big).astype(jnp.bfloat16)             # (L, G, G)
    whh_big = jnp.stack(whh_big).astype(jnp.bfloat16)             # (L, G, G)
    bias = jnp.stack(bias)                                        # (L, 1, G)

    def _place(s):                                                # (L, B, H) -> g slot of (L, Bp, G)
        return jnp.zeros((L, Bp, G), jnp.float32).at[:, :B, 2 * H:3 * H].set(s)
    h0 = _place(h0_all)
    c0 = _place(c0_all)

    w_lin, b_lin = lin_params                                     # (P, H), (P,)
    wl = jnp.zeros((1, G), jnp.float32).at[0, 2 * H:3 * H].set(w_lin[-1])
    bl = jnp.full((1, 1), b_lin[-1], jnp.float32)

    # Need-based VMEM budget; capped at 64 MiB so the same value fits v7x.
    f32b = 4
    vmem_need = (2 * T * Bp * G * f32b            # seq ping/pong scratch
                 + T * Bp * G * f32b              # x input
                 + 2 * L * G * G * 2              # bf16 weights
                 + 2 * L * Bp * G * f32b          # h0 / c0
                 + L * G * f32b + G * f32b + pred_len * Bp * f32b)
    vmem_limit = int(min(64 * 1024 * 1024, max(16 * 1024 * 1024, 2 * vmem_need)))

    out = pl.pallas_call(
        fused_lstm_kernel,
        out_shape=jax.ShapeDtypeStruct((pred_len, Bp), jnp.float32),
        in_specs=[_vmem()] * 7 + [_smem()],
        out_specs=_vmem(),
        scratch_shapes=[
            pltpu.VMEM((T, Bp, G), jnp.float32),   # seq ping (z_in -> h)
            pltpu.VMEM((T, Bp, G), jnp.float32),   # seq pong
        ],
        compiler_params=pltpu.CompilerParams(vmem_limit_bytes=vmem_limit),
    )(x, wih_big, whh_big, bias, h0, c0, wl, bl)

    return out[:, :B].T                                           # (B, pred_len)


# ----------------------------------------------------------------------------
# Pure-JAX reference (correctness check only, full f32)
# ----------------------------------------------------------------------------
def lstm_ref(input_seq, init_base, lstm_params, lin_params, pred_len):
    h0_all, c0_all = init_base
    B, T, _ = input_seq.shape
    x = input_seq
    for layer, (w_ih, w_hh, b_ih, b_hh) in enumerate(lstm_params):
        H = w_hh.shape[1]
        h, c = h0_all[layer], c0_all[layer]
        outs = []
        for t in range(T):
            z = x[:, t, :] @ w_ih.T + b_ih + h @ w_hh.T + b_hh
            i = jax.nn.sigmoid(z[:, 0 * H:1 * H])
            f = jax.nn.sigmoid(z[:, 1 * H:2 * H])
            g = jnp.tanh(z[:, 2 * H:3 * H])
            o = jax.nn.sigmoid(z[:, 3 * H:4 * H])
            c = f * c + i * g
            h = o * jnp.tanh(c)
            outs.append(h)
        x = jnp.stack(outs, axis=1)
    w_lin, b_lin = lin_params
    predicts = x @ w_lin.T + b_lin
    return predicts[:, -pred_len:, -1]


# ----------------------------------------------------------------------------
# Main
# ----------------------------------------------------------------------------
if __name__ == "__main__":
    input_size, h_size, num_layers, pred_len = 4, 32, 2, 4
    batch, seq_len = 2, 8

    key = jax.random.PRNGKey(0)
    scale = 1.0 / math.sqrt(h_size)   # PyTorch default uniform(-1/sqrt(H), 1/sqrt(H))

    lstm_params = []
    for layer in range(num_layers):
        d_in = input_size if layer == 0 else h_size
        key, k1, k2, k3, k4 = jax.random.split(key, 5)
        w_ih = jax.random.uniform(k1, (4 * h_size, d_in), jnp.float32, -scale, scale)
        w_hh = jax.random.uniform(k2, (4 * h_size, h_size), jnp.float32, -scale, scale)
        b_ih = jax.random.uniform(k3, (4 * h_size,), jnp.float32, -scale, scale)
        b_hh = jax.random.uniform(k4, (4 * h_size,), jnp.float32, -scale, scale)
        lstm_params.append((w_ih, w_hh, b_ih, b_hh))

    key, k5, k6 = jax.random.split(key, 3)
    w_lin = jax.random.uniform(k5, (pred_len, h_size), jnp.float32, -scale, scale)
    b_lin = jax.random.uniform(k6, (pred_len,), jnp.float32, -scale, scale)
    lin_params = (w_lin, b_lin)

    key, kx, kh, kc = jax.random.split(key, 4)
    input_seq = jax.random.normal(kx, (batch, seq_len, input_size), jnp.float32)
    h0 = jax.random.normal(kh, (num_layers, batch, h_size), jnp.float32)
    c0 = jax.random.normal(kc, (num_layers, batch, h_size), jnp.float32)
    init_base = (h0, c0)

    out = lstm_model_forward(input_seq, init_base, lstm_params, lin_params, pred_len)
    out = jax.block_until_ready(out)

    ref = lstm_ref(input_seq, init_base, lstm_params, lin_params, pred_len)
    assert out.shape == (batch, pred_len), out.shape
    # bf16 MXU operands through a T-step recurrence: expect ~1e-2 deviation from
    # the pure-f32 reference; state / elementwise math is f32 in the kernel.
    assert jnp.allclose(out, ref, atol=3e-2, rtol=3e-2), (out, ref)

    print("KERNEL_OK")
</pallas_src>

<mosaic_0001>
module attributes {stable_mosaic.version = 11 : i64} {
  func.func @fused_lstm_kernel(%arg0: memref<8x8x128xf32, #tpu.memory_space<vmem>>, %arg1: memref<2x128x128xbf16, #tpu.memory_space<vmem>>, %arg2: memref<2x128x128xbf16, #tpu.memory_space<vmem>>, %arg3: memref<2x1x128xf32, #tpu.memory_space<vmem>>, %arg4: memref<2x8x128xf32, #tpu.memory_space<vmem>>, %arg5: memref<2x8x128xf32, #tpu.memory_space<vmem>>, %arg6: memref<1x128xf32, #tpu.memory_space<vmem>>, %arg7: memref<1x1xf32, #tpu.memory_space<smem>>, %arg8: memref<4x8xf32, #tpu.memory_space<vmem>>, %arg9: memref<8x8x128xf32, #tpu.memory_space<vmem>>, %arg10: memref<8x8x128xf32, #tpu.memory_space<vmem>>) attributes {dimension_semantics = [], scalar_prefetch = 0 : i64, scratch_operands = 2 : i64, tpu.core_type = #tpu.core_type<tc>} {
    %0 = tpu.iota {dimensions = array<i32: 1>} : vector<8x128xi32>
    %c64_i32 = arith.constant 64 : i32
    %1 = vector.broadcast %c64_i32 : i32 to vector<8x128xi32>
    %2 = arith.cmpi sge, %0, %1 : vector<8x128xi32>
    %c96_i32 = arith.constant 96 : i32
    %3 = vector.broadcast %c96_i32 : i32 to vector<8x128xi32>
    %4 = arith.cmpi slt, %0, %3 : vector<8x128xi32>
    %5 = arith.andi %2, %4 : vector<8x128xi1>
    %c0 = arith.constant 0 : index
    %c0_0 = arith.constant 0 : index
    %c0_1 = arith.constant 0 : index
    %6 = vector.load %arg0[%c0, %c0_0, %c0_1] : memref<8x8x128xf32, #tpu.memory_space<vmem>>, vector<8x8x128xf32>
    %7 = vector.shape_cast %6 : vector<8x8x128xf32> to vector<64x128xf32>
    %8 = arith.truncf %7 : vector<64x128xf32> to vector<64x128xbf16>
    %c0_2 = arith.constant 0 : index
    %c0_3 = arith.constant 0 : index
    %c0_4 = arith.constant 0 : index
    %9 = vector.load %arg1[%c0_2, %c0_3, %c0_4] : memref<2x128x128xbf16, #tpu.memory_space<vmem>>, vector<1x128x128xbf16>
    %10 = vector.shape_cast %9 : vector<1x128x128xbf16> to vector<128x128xbf16>
    %cst = arith.constant dense<0.000000e+00> : vector<64x128xf32>
    %11 = tpu.matmul %8, %10, %cst {dimension_numbers = #tpu.dot_dimension_numbers<[1], [0], [0], [1], [0, 0, 1, 1], [], []>} : vector<64x128xbf16>, vector<128x128xbf16>, vector<64x128xf32> -> vector<64x128xf32>
    %c0_5 = arith.constant 0 : index
    %c0_6 = arith.constant 0 : index
    %c0_7 = arith.constant 0 : index
    %12 = vector.load %arg3[%c0_5, %c0_6, %c0_7] : memref<2x1x128xf32, #tpu.memory_space<vmem>>, vector<1x1x128xf32>
    %13 = vector.shape_cast %12 : vector<1x1x128xf32> to vector<1x128xf32>
    %14 = vector.broadcast %13 : vector<1x128xf32> to vector<64x128xf32>
    %15 = arith.addf %11, %14 : vector<64x128xf32>
    %16 = vector.shape_cast %15 : vector<64x128xf32> to vector<8x8x128xf32>
    %c0_8 = arith.constant 0 : index
    %c0_9 = arith.constant 0 : index
    %c0_10 = arith.constant 0 : index
    %17 = vector.load %arg9[%c0_8, %c0_9, %c0_10] : memref<8x8x128xf32, #tpu.memory_space<vmem>>, vector<8x8x128xf32>
    tpu.vector_store %arg9[%c0_8, %c0_9, %c0_10], %16 {strides = array<i32>} : memref<8x8x128xf32, #tpu.memory_space<vmem>>, vector<8x8x128xf32>,
    %c0_11 = arith.constant 0 : index
    %c0_12 = arith.constant 0 : index
    %c0_13 = arith.constant 0 : index
    %18 = vector.load %arg2[%c0_11, %c0_12, %c0_13] : memref<2x128x128xbf16, #tpu.memory_space<vmem>>, vector<1x128x128xbf16>
    %19 = vector.shape_cast %18 : vector<1x128x128xbf16> to vector<128x128xbf16>
    %c0_14 = arith.constant 0 : index
    %c0_15 = arith.constant 0 : index
    %c0_16 = arith.constant 0 : index
    %20 = vector.load %arg4[%c0_14, %c0_15, %c0_16] : memref<2x8x128xf32, #tpu.memory_space<vmem>>, vector<1x8x128xf32>
    %21 = vector.shape_cast %20 : vector<1x8x128xf32> to vector<8x128xf32>
    %c0_17 = arith.constant 0 : index
    %c0_18 = arith.constant 0 : index
    %c0_19 = arith.constant 0 : index
    %22 = vector.load %arg5[%c0_17, %c0_18, %c0_19] : memref<2x8x128xf32, #tpu.memory_space<vmem>>, vector<1x8x128xf32>
    %23 = vector.shape_cast %22 : vector<1x8x128xf32> to vector<8x128xf32>
    %c0_i32 = arith.constant 0 : i32
    %24 = arith.index_cast %c0_i32 : i32 to index
    %c0_20 = arith.constant 0 : index
    %c0_21 = arith.constant 0 : index
    %25 = vector.load %arg9[%24, %c0_20, %c0_21] : memref<8x8x128xf32, #tpu.memory_space<vmem>>, vector<1x8x128xf32>
    %26 = vector.shape_cast %25 : vector<1x8x128xf32> to vector<8x128xf32>
    %27 = arith.truncf %21 : vector<8x128xf32> to vector<8x128xbf16>
    %cst_22 = arith.constant dense<0.000000e+00> : vector<8x128xf32>
    %28 = tpu.matmul %27, %19, %cst_22 {dimension_numbers = #tpu.dot_dimension_numbers<[1], [0], [0], [1], [0, 0, 1, 1], [], []>} : vector<8x128xbf16>, vector<128x128xbf16>, vector<8x128xf32> -> vector<8x128xf32>
    %29 = arith.addf %26, %28 : vector<8x128xf32>
    %cst_23 = arith.constant 5.000000e-01 : f32
    %30 = vector.broadcast %cst_23 : f32 to vector<8x128xf32>
    %31 = arith.mulf %30, %29 : vector<8x128xf32>
    %32 = arith.select %5, %29, %31 : vector<8x128xi1>, vector<8x128xf32>
    %33 = math.tanh %32 : vector<8x128xf32>
    %cst_24 = arith.constant 5.000000e-01 : f32
    %34 = vector.broadcast %cst_24 : f32 to vector<8x128xf32>
    %35 = arith.mulf %34, %33 : vector<8x128xf32>
    %cst_25 = arith.constant 5.000000e-01 : f32
    %36 = vector.broadcast %cst_25 : f32 to vector<8x128xf32>
    %37 = arith.addf %35, %36 : vector<8x128xf32>
    %38 = arith.select %5, %33, %37 : vector<8x128xi1>, vector<8x128xf32>
    %c64_i32_26 = arith.constant 64 : i32
    %39 = tpu.dynamic_rotate %38 by %c64_i32_26 dim 1 : vector<8x128xf32>, i32 -> vector<8x128xf32>
    %c32_i32 = arith.constant 32 : i32
    %40 = tpu.dynamic_rotate %38 by %c32_i32 dim 1 : vector<8x128xf32>, i32 -> vector<8x128xf32>
    %c96_i32_27 = arith.constant 96 : i32
    %41 = tpu.dynamic_rotate %38 by %c96_i32_27 dim 1 : vector<8x128xf32>, i32 -> vector<8x128xf32>
    %42 = arith.mulf %40, %23 : vector<8x128xf32>
    %43 = arith.mulf %39, %38 : vector<8x128xf32>
    %44 = arith.addf %42, %43 : vector<8x128xf32>
    %cst_28 = arith.constant 0.000000e+00 : f32
    %45 = vector.broadcast %cst_28 : f32 to vector<8x128xf32>
    %46 = arith.select %5, %44, %45 : vector<8x128xi1>, vector<8x128xf32>
    %47 = math.tanh %46 : vector<8x128xf32>
    %48 = arith.mulf %41, %47 : vector<8x128xf32>
    %49 = arith.index_cast %c0_i32 : i32 to index
    %c0_29 = arith.constant 0 : index
    %c0_30 = arith.constant 0 : index
    %50 = vector.load %arg9[%49, %c0_29, %c0_30] : memref<8x8x128xf32, #tpu.memory_space<vmem>>, vector<1x8x128xf32>
    %51 = vector.shape_cast %50 : vector<1x8x128xf32> to vector<8x128xf32>
    %52 = vector.shape_cast %48 : vector<8x128xf32> to vector<1x8x128xf32>
    tpu.vector_store %arg9[%49, %c0_29, %c0_30], %52 {strides = array<i32>} : memref<8x8x128xf32, #tpu.memory_space<vmem>>, vector<1x8x128xf32>,
    %c1_i32 = arith.constant 1 : i32
    %53 = arith.index_cast %c1_i32 : i32 to index
    %c0_31 = arith.constant 0 : index
    %c0_32 = arith.constant 0 : index
    %54 = vector.load %arg9[%53, %c0_31, %c0_32] : memref<8x8x128xf32, #tpu.memory_space<vmem>>, vector<1x8x128xf32>
    %55 = vector.shape_cast %54 : vector<1x8x128xf32> to vector<8x128xf32>
    %56 = arith.truncf %48 : vector<8x128xf32> to vector<8x128xbf16>
    %cst_33 = arith.constant dense<0.000000e+00> : vector<8x128xf32>
    %57 = tpu.matmul %56, %19, %cst_33 {dimension_numbers = #tpu.dot_dimension_numbers<[1], [0], [0], [1], [0, 0, 1, 1], [], []>} : vector<8x128xbf16>, vector<128x128xbf16>, vector<8x128xf32> -> vector<8x128xf32>
    %58 = arith.addf %55, %57 : vector<8x128xf32>
    %cst_34 = arith.constant 5.000000e-01 : f32
    %59 = vector.broadcast %cst_34 : f32 to vector<8x128xf32>
    %60 = arith.mulf %59, %58 : vector<8x128xf32>
    %61 = arith.select %5, %58, %60 : vector<8x128xi1>, vector<8x128xf32>
    %62 = math.tanh %61 : vector<8x128xf32>
    %cst_35 = arith.constant 5.000000e-01 : f32
    %63 = vector.broadcast %cst_35 : f32 to vector<8x128xf32>
    %64 = arith.mulf %63, %62 : vector<8x128xf32>
    %cst_36 = arith.constant 5.000000e-01 : f32
    %65 = vector.broadcast %cst_36 : f32 to vector<8x128xf32>
    %66 = arith.addf %64, %65 : vector<8x128xf32>
    %67 = arith.select %5, %62, %66 : vector<8x128xi1>, vector<8x128xf32>
    %c64_i32_37 = arith.constant 64 : i32
    %68 = tpu.dynamic_rotate %67 by %c64_i32_37 dim 1 : vector<8x128xf32>, i32 -> vector<8x128xf32>
    %c32_i32_38 = arith.constant 32 : i32
    %69 = tpu.dynamic_rotate %67 by %c32_i32_38 dim 1 : vector<8x128xf32>, i32 -> vector<8x128xf32>
    %c96_i32_39 = arith.constant 96 : i32
    %70 = tpu.dynamic_rotate %67 by %c96_i32_39 dim 1 : vector<8x128xf32>, i32 -> vector<8x128xf32>
    %71 = arith.mulf %69, %46 : vector<8x128xf32>
    %72 = arith.mulf %68, %67 : vector<8x128xf32>
    %73 = arith.addf %71, %72 : vector<8x128xf32>
    %cst_40 = arith.constant 0.000000e+00 : f32
    %74 = vector.broadcast %cst_40 : f32 to vector<8x128xf32>
    %75 = arith.select %5, %73, %74 : vector<8x128xi1>, vector<8x128xf32>
    %76 = math.tanh %75 : vector<8x128xf32>
    %77 = arith.mulf %70, %76 : vector<8x128xf32>
    %78 = arith.index_cast %c1_i32 : i32 to index
    %c0_41 = arith.constant 0 : index
    %c0_42 = arith.constant 0 : index
    %79 = vector.load %arg9[%78, %c0_41, %c0_42] : memref<8x8x128xf32, #tpu.memory_space<vmem>>, vector<1x8x128xf32>
    %80 = vector.shape_cast %79 : vector<1x8x128xf32> to vector<8x128xf32>
    %81 = vector.shape_cast %77 : vector<8x128xf32> to vector<1x8x128xf32>
    tpu.vector_store %arg9[%78, %c0_41, %c0_42], %81 {strides = array<i32>} : memref<8x8x128xf32, #tpu.memory_space<vmem>>, vector<1x8x128xf32>,
    %c2_i32 = arith.constant 2 : i32
    %82 = arith.index_cast %c2_i32 : i32 to index
    %c0_43 = arith.constant 0 : index
    %c0_44 = arith.constant 0 : index
    %83 = vector.load %arg9[%82, %c0_43, %c0_44] : memref<8x8x128xf32, #tpu.memory_space<vmem>>, vector<1x8x128xf32>
    %84 = vector.shape_cast %83 : vector<1x8x128xf32> to vector<8x128xf32>
    %85 = arith.truncf %77 : vector<8x128xf32> to vector<8x128xbf16>
    %cst_45 = arith.constant dense<0.000000e+00> : vector<8x128xf32>
    %86 = tpu.matmul %85, %19, %cst_45 {dimension_numbers = #tpu.dot_dimension_numbers<[1], [0], [0], [1], [0, 0, 1, 1], [], []>} : vector<8x128xbf16>, vector<128x128xbf16>, vector<8x128xf32> -> vector<8x128xf32>
    %87 = arith.addf %84, %86 : vector<8x128xf32>
    %cst_46 = arith.constant 5.000000e-01 : f32
    %88 = vector.broadcast %cst_46 : f32 to vector<8x128xf32>
    %89 = arith.mulf %88, %87 : vector<8x128xf32>
    %90 = arith.select %5, %87, %89 : vector<8x128xi1>, vector<8x128xf32>
    %91 = math.tanh %90 : vector<8x128xf32>
    %cst_47 = arith.constant 5.000000e-01 : f32
    %92 = vector.broadcast %cst_47 : f32 to vector<8x128xf32>
    %93 = arith.mulf %92, %91 : vector<8x128xf32>
    %cst_48 = arith.constant 5.000000e-01 : f32
    %94 = vector.broadcast %cst_48 : f32 to vector<8x128xf32>
    %95 = arith.addf %93, %94 : vector<8x128xf32>
    %96 = arith.select %5, %91, %95 : vector<8x128xi1>, vector<8x128xf32>
    %c64_i32_49 = arith.constant 64 : i32
    %97 = tpu.dynamic_rotate %96 by %c64_i32_49 dim 1 : vector<8x128xf32>, i32 -> vector<8x128xf32>
    %c32_i32_50 = arith.constant 32 : i32
    %98 = tpu.dynamic_rotate %96 by %c32_i32_50 dim 1 : vector<8x128xf32>, i32 -> vector<8x128xf32>
    %c96_i32_51 = arith.constant 96 : i32
    %99 = tpu.dynamic_rotate %96 by %c96_i32_51 dim 1 : vector<8x128xf32>, i32 -> vector<8x128xf32>
    %100 = arith.mulf %98, %75 : vector<8x128xf32>
    %101 = arith.mulf %97, %96 : vector<8x128xf32>
    %102 = arith.addf %100, %101 : vector<8x128xf32>
    %cst_52 = arith.constant 0.000000e+00 : f32
    %103 = vector.broadcast %cst_52 : f32 to vector<8x128xf32>
    %104 = arith.select %5, %102, %103 : vector<8x128xi1>, vector<8x128xf32>
    %105 = math.tanh %104 : vector<8x128xf32>
    %106 = arith.mulf %99, %105 : vector<8x128xf32>
    %107 = arith.index_cast %c2_i32 : i32 to index
    %c0_53 = arith.constant 0 : index
    %c0_54 = arith.constant 0 : index
    %108 = vector.load %arg9[%107, %c0_53, %c0_54] : memref<8x8x128xf32, #tpu.memory_space<vmem>>, vector<1x8x128xf32>
    %109 = vector.shape_cast %108 : vector<1x8x128xf32> to vector<8x128xf32>
    %110 = vector.shape_cast %106 : vector<8x128xf32> to vector<1x8x128xf32>
    tpu.vector_store %arg9[%107, %c0_53, %c0_54], %110 {strides = array<i32>} : memref<8x8x128xf32, #tpu.memory_space<vmem>>, vector<1x8x128xf32>,
    %c3_i32 = arith.constant 3 : i32
    %111 = arith.index_cast %c3_i32 : i32 to index
    %c0_55 = arith.constant 0 : index
    %c0_56 = arith.constant 0 : index
    %112 = vector.load %arg9[%111, %c0_55, %c0_56] : memref<8x8x128xf32, #tpu.memory_space<vmem>>, vector<1x8x128xf32>
    %113 = vector.shape_cast %112 : vector<1x8x128xf32> to vector<8x128xf32>
    %114 = arith.truncf %106 : vector<8x128xf32> to vector<8x128xbf16>
    %cst_57 = arith.constant dense<0.000000e+00> : vector<8x128xf32>
    %115 = tpu.matmul %114, %19, %cst_57 {dimension_numbers = #tpu.dot_dimension_numbers<[1], [0], [0], [1], [0, 0, 1, 1], [], []>} : vector<8x128xbf16>, vector<128x128xbf16>, vector<8x128xf32> -> vector<8x128xf32>
    %116 = arith.addf %113, %115 : vector<8x128xf32>
    %cst_58 = arith.constant 5.000000e-01 : f32
    %117 = vector.broadcast %cst_58 : f32 to vector<8x128xf32>
    %118 = arith.mulf %117, %116 : vector<8x128xf32>
    %119 = arith.select %5, %116, %118 : vector<8x128xi1>, vector<8x128xf32>
    %120 = math.tanh %119 : vector<8x128xf32>
    %cst_59 = arith.constant 5.000000e-01 : f32
    %121 = vector.broadcast %cst_59 : f32 to vector<8x128xf32>
    %122 = arith.mulf %121, %120 : vector<8x128xf32>
    %cst_60 = arith.constant 5.000000e-01 : f32
    %123 = vector.broadcast %cst_60 : f32 to vector<8x128xf32>
    %124 = arith.addf %122, %123 : vector<8x128xf32>
    %125 = arith.select %5, %120, %124 : vector<8x128xi1>, vector<8x128xf32>
    %c64_i32_61 = arith.constant 64 : i32
    %126 = tpu.dynamic_rotate %125 by %c64_i32_61 dim 1 : vector<8x128xf32>, i32 -> vector<8x128xf32>
    %c32_i32_62 = arith.constant 32 : i32
    %127 = tpu.dynamic_rotate %125 by %c32_i32_62 dim 1 : vector<8x128xf32>, i32 -> vector<8x128xf32>
    %c96_i32_63 = arith.constant 96 : i32
    %128 = tpu.dynamic_rotate %125 by %c96_i32_63 dim 1 : vector<8x128xf32>, i32 -> vector<8x128xf32>
    %129 = arith.mulf %127, %104 : vector<8x128xf32>
    %130 = arith.mulf %126, %125 : vector<8x128xf32>
    %131 = arith.addf %129, %130 : vector<8x128xf32>
    %cst_64 = arith.constant 0.000000e+00 : f32
    %132 = vector.broadcast %cst_64 : f32 to vector<8x128xf32>
    %133 = arith.select %5, %131, %132 : vector<8x128xi1>, vector<8x128xf32>
    %134 = math.tanh %133 : vector<8x128xf32>
    %135 = arith.mulf %128, %134 : vector<8x128xf32>
    %136 = arith.index_cast %c3_i32 : i32 to index
    %c0_65 = arith.constant 0 : index
    %c0_66 = arith.constant 0 : index
    %137 = vector.load %arg9[%136, %c0_65, %c0_66] : memref<8x8x128xf32, #tpu.memory_space<vmem>>, vector<1x8x128xf32>
    %138 = vector.shape_cast %137 : vector<1x8x128xf32> to vector<8x128xf32>
    %139 = vector.shape_cast %135 : vector<8x128xf32> to vector<1x8x128xf32>
    tpu.vector_store %arg9[%136, %c0_65, %c0_66], %139 {strides = array<i32>} : memref<8x8x128xf32, #tpu.memory_space<vmem>>, vector<1x8x128xf32>,
    %c4_i32 = arith.constant 4 : i32
    %140 = arith.index_cast %c4_i32 : i32 to index
    %c0_67 = arith.constant 0 : index
    %c0_68 = arith.constant 0 : index
    %141 = vector.load %arg9[%140, %c0_67, %c0_68] : memref<8x8x128xf32, #tpu.memory_space<vmem>>, vector<1x8x128xf32>
    %142 = vector.shape_cast %141 : vector<1x8x128xf32> to vector<8x128xf32>
    %143 = arith.truncf %135 : vector<8x128xf32> to vector<8x128xbf16>
    %cst_69 = arith.constant dense<0.000000e+00> : vector<8x128xf32>
    %144 = tpu.matmul %143, %19, %cst_69 {dimension_numbers = #tpu.dot_dimension_numbers<[1], [0], [0], [1], [0, 0, 1, 1], [], []>} : vector<8x128xbf16>, vector<128x128xbf16>, vector<8x128xf32> -> vector<8x128xf32>
    %145 = arith.addf %142, %144 : vector<8x128xf32>
    %cst_70 = arith.constant 5.000000e-01 : f32
    %146 = vector.broadcast %cst_70 : f32 to vector<8x128xf32>
    %147 = arith.mulf %146, %145 : vector<8x128xf32>
    %148 = arith.select %5, %145, %147 : vector<8x128xi1>, vector<8x128xf32>
    %149 = math.tanh %148 : vector<8x128xf32>
    %cst_71 = arith.constant 5.000000e-01 : f32
    %150 = vector.broadcast %cst_71 : f32 to vector<8x128xf32>
    %151 = arith.mulf %150, %149 : vector<8x128xf32>
    %cst_72 = arith.constant 5.000000e-01 : f32
    %152 = vector.broadcast %cst_72 : f32 to vector<8x128xf32>
    %153 = arith.addf %151, %152 : vector<8x128xf32>
    %154 = arith.select %5, %149, %153 : vector<8x128xi1>, vector<8x128xf32>
    %c64_i32_73 = arith.constant 64 : i32
    %155 = tpu.dynamic_rotate %154 by %c64_i32_73 dim 1 : vector<8x128xf32>, i32 -> vector<8x128xf32>
    %c32_i32_74 = arith.constant 32 : i32
    %156 = tpu.dynamic_rotate %154 by %c32_i32_74 dim 1 : vector<8x128xf32>, i32 -> vector<8x128xf32>
    %c96_i32_75 = arith.constant 96 : i32
    %157 = tpu.dynamic_rotate %154 by %c96_i32_75 dim 1 : vector<8x128xf32>, i32 -> vector<8x128xf32>
    %158 = arith.mulf %156, %133 : vector<8x128xf32>
    %159 = arith.mulf %155, %154 : vector<8x128xf32>
    %160 = arith.addf %158, %159 : vector<8x128xf32>
    %cst_76 = arith.constant 0.000000e+00 : f32
    %161 = vector.broadcast %cst_76 : f32 to vector<8x128xf32>
    %162 = arith.select %5, %160, %161 : vector<8x128xi1>, vector<8x128xf32>
    %163 = math.tanh %162 : vector<8x128xf32>
    %164 = arith.mulf %157, %163 : vector<8x128xf32>
    %165 = arith.index_cast %c4_i32 : i32 to index
    %c0_77 = arith.constant 0 : index
    %c0_78 = arith.constant 0 : index
    %166 = vector.load %arg9[%165, %c0_77, %c0_78] : memref<8x8x128xf32, #tpu.memory_space<vmem>>, vector<1x8x128xf32>
    %167 = vector.shape_cast %166 : vector<1x8x128xf32> to vector<8x128xf32>
    %168 = vector.shape_cast %164 : vector<8x128xf32> to vector<1x8x128xf32>
    tpu.vector_store %arg9[%165, %c0_77, %c0_78], %168 {strides = array<i32>} : memref<8x8x128xf32, #tpu.memory_space<vmem>>, vector<1x8x128xf32>,
    %c5_i32 = arith.constant 5 : i32
    %169 = arith.index_cast %c5_i32 : i32 to index
    %c0_79 = arith.constant 0 : index
    %c0_80 = arith.constant 0 : index
    %170 = vector.load %arg9[%169, %c0_79, %c0_80] : memref<8x8x128xf32, #tpu.memory_space<vmem>>, vector<1x8x128xf32>
    %171 = vector.shape_cast %170 : vector<1x8x128xf32> to vector<8x128xf32>
    %172 = arith.truncf %164 : vector<8x128xf32> to vector<8x128xbf16>
    %cst_81 = arith.constant dense<0.000000e+00> : vector<8x128xf32>
    %173 = tpu.matmul %172, %19, %cst_81 {dimension_numbers = #tpu.dot_dimension_numbers<[1], [0], [0], [1], [0, 0, 1, 1], [], []>} : vector<8x128xbf16>, vector<128x128xbf16>, vector<8x128xf32> -> vector<8x128xf32>
    %174 = arith.addf %171, %173 : vector<8x128xf32>
    %cst_82 = arith.constant 5.000000e-01 : f32
    %175 = vector.broadcast %cst_82 : f32 to vector<8x128xf32>
    %176 = arith.mulf %175, %174 : vector<8x128xf32>
    %177 = arith.select %5, %174, %176 : vector<8x128xi1>, vector<8x128xf32>
    %178 = math.tanh %177 : vector<8x128xf32>
    %cst_83 = arith.constant 5.000000e-01 : f32
    %179 = vector.broadcast %cst_83 : f32 to vector<8x128xf32>
    %180 = arith.mulf %179, %178 : vector<8x128xf32>
    %cst_84 = arith.constant 5.000000e-01 : f32
    %181 = vector.broadcast %cst_84 : f32 to vector<8x128xf32>
    %182 = arith.addf %180, %181 : vector<8x128xf32>
    %183 = arith.select %5, %178, %182 : vector<8x128xi1>, vector<8x128xf32>
    %c64_i32_85 = arith.constant 64 : i32
    %184 = tpu.dynamic_rotate %183 by %c64_i32_85 dim 1 : vector<8x128xf32>, i32 -> vector<8x128xf32>
    %c32_i32_86 = arith.constant 32 : i32
    %185 = tpu.dynamic_rotate %183 by %c32_i32_86 dim 1 : vector<8x128xf32>, i32 -> vector<8x128xf32>
    %c96_i32_87 = arith.constant 96 : i32
    %186 = tpu.dynamic_rotate %183 by %c96_i32_87 dim 1 : vector<8x128xf32>, i32 -> vector<8x128xf32>
    %187 = arith.mulf %185, %162 : vector<8x128xf32>
    %188 = arith.mulf %184, %183 : vector<8x128xf32>
    %189 = arith.addf %187, %188 : vector<8x128xf32>
    %cst_88 = arith.constant 0.000000e+00 : f32
    %190 = vector.broadcast %cst_88 : f32 to vector<8x128xf32>
    %191 = arith.select %5, %189, %190 : vector<8x128xi1>, vector<8x128xf32>
    %192 = math.tanh %191 : vector<8x128xf32>
    %193 = arith.mulf %186, %192 : vector<8x128xf32>
    %194 = arith.index_cast %c5_i32 : i32 to index
    %c0_89 = arith.constant 0 : index
    %c0_90 = arith.constant 0 : index
    %195 = vector.load %arg9[%194, %c0_89, %c0_90] : memref<8x8x128xf32, #tpu.memory_space<vmem>>, vector<1x8x128xf32>
    %196 = vector.shape_cast %195 : vector<1x8x128xf32> to vector<8x128xf32>
    %197 = vector.shape_cast %193 : vector<8x128xf32> to vector<1x8x128xf32>
    tpu.vector_store %arg9[%194, %c0_89, %c0_90], %197 {strides = array<i32>} : memref<8x8x128xf32, #tpu.memory_space<vmem>>, vector<1x8x128xf32>,
    %c6_i32 = arith.constant 6 : i32
    %198 = arith.index_cast %c6_i32 : i32 to index
    %c0_91 = arith.constant 0 : index
    %c0_92 = arith.constant 0 : index
    %199 = vector.load %arg9[%198, %c0_91, %c0_92] : memref<8x8x128xf32, #tpu.memory_space<vmem>>, vector<1x8x128xf32>
    %200 = vector.shape_cast %199 : vector<1x8x128xf32> to vector<8x128xf32>
    %201 = arith.truncf %193 : vector<8x128xf32> to vector<8x128xbf16>
    %cst_93 = arith.constant dense<0.000000e+00> : vector<8x128xf32>
    %202 = tpu.matmul %201, %19, %cst_93 {dimension_numbers = #tpu.dot_dimension_numbers<[1], [0], [0], [1], [0, 0, 1, 1], [], []>} : vector<8x128xbf16>, vector<128x128xbf16>, vector<8x128xf32> -> vector<8x128xf32>
    %203 = arith.addf %200, %202 : vector<8x128xf32>
    %cst_94 = arith.constant 5.000000e-01 : f32
    %204 = vector.broadcast %cst_94 : f32 to vector<8x128xf32>
    %205 = arith.mulf %204, %203 : vector<8x128xf32>
    %206 = arith.select %5, %203, %205 : vector<8x128xi1>, vector<8x128xf32>
    %207 = math.tanh %206 : vector<8x128xf32>
    %cst_95 = arith.constant 5.000000e-01 : f32
    %208 = vector.broadcast %cst_95 : f32 to vector<8x128xf32>
    %209 = arith.mulf %208, %207 : vector<8x128xf32>
    %cst_96 = arith.constant 5.000000e-01 : f32
    %210 = vector.broadcast %cst_96 : f32 to vector<8x128xf32>
    %211 = arith.addf %209, %210 : vector<8x128xf32>
    %212 = arith.select %5, %207, %211 : vector<8x128xi1>, vector<8x128xf32>
    %c64_i32_97 = arith.constant 64 : i32
    %213 = tpu.dynamic_rotate %212 by %c64_i32_97 dim 1 : vector<8x128xf32>, i32 -> vector<8x128xf32>
    %c32_i32_98 = arith.constant 32 : i32
    %214 = tpu.dynamic_rotate %212 by %c32_i32_98 dim 1 : vector<8x128xf32>, i32 -> vector<8x128xf32>
    %c96_i32_99 = arith.constant 96 : i32
    %215 = tpu.dynamic_rotate %212 by %c96_i32_99 dim 1 : vector<8x128xf32>, i32 -> vector<8x128xf32>
    %216 = arith.mulf %214, %191 : vector<8x128xf32>
    %217 = arith.mulf %213, %212 : vector<8x128xf32>
    %218 = arith.addf %216, %217 : vector<8x128xf32>
    %cst_100 = arith.constant 0.000000e+00 : f32
    %219 = vector.broadcast %cst_100 : f32 to vector<8x128xf32>
    %220 = arith.select %5, %218, %219 : vector<8x128xi1>, vector<8x128xf32>
    %221 = math.tanh %220 : vector<8x128xf32>
    %222 = arith.mulf %215, %221 : vector<8x128xf32>
    %223 = arith.index_cast %c6_i32 : i32 to index
    %c0_101 = arith.constant 0 : index
    %c0_102 = arith.constant 0 : index
    %224 = vector.load %arg9[%223, %c0_101, %c0_102] : memref<8x8x128xf32, #tpu.memory_space<vmem>>, vector<1x8x128xf32>
    %225 = vector.shape_cast %224 : vector<1x8x128xf32> to vector<8x128xf32>
    %226 = vector.shape_cast %222 : vector<8x128xf32> to vector<1x8x128xf32>
    tpu.vector_store %arg9[%223, %c0_101, %c0_102], %226 {strides = array<i32>} : memref<8x8x128xf32, #tpu.memory_space<vmem>>, vector<1x8x128xf32>,
    %c7_i32 = arith.constant 7 : i32
    %227 = arith.index_cast %c7_i32 : i32 to index
    %c0_103 = arith.constant 0 : index
    %c0_104 = arith.constant 0 : index
    %228 = vector.load %arg9[%227, %c0_103, %c0_104] : memref<8x8x128xf32, #tpu.memory_space<vmem>>, vector<1x8x128xf32>
    %229 = vector.shape_cast %228 : vector<1x8x128xf32> to vector<8x128xf32>
    %230 = arith.truncf %222 : vector<8x128xf32> to vector<8x128xbf16>
    %cst_105 = arith.constant dense<0.000000e+00> : vector<8x128xf32>
    %231 = tpu.matmul %230, %19, %cst_105 {dimension_numbers = #tpu.dot_dimension_numbers<[1], [0], [0], [1], [0, 0, 1, 1], [], []>} : vector<8x128xbf16>, vector<128x128xbf16>, vector<8x128xf32> -> vector<8x128xf32>
    %232 = arith.addf %229, %231 : vector<8x128xf32>
    %cst_106 = arith.constant 5.000000e-01 : f32
    %233 = vector.broadcast %cst_106 : f32 to vector<8x128xf32>
    %234 = arith.mulf %233, %232 : vector<8x128xf32>
    %235 = arith.select %5, %232, %234 : vector<8x128xi1>, vector<8x128xf32>
    %236 = math.tanh %235 : vector<8x128xf32>
    %cst_107 = arith.constant 5.000000e-01 : f32
    %237 = vector.broadcast %cst_107 : f32 to vector<8x128xf32>
    %238 = arith.mulf %237, %236 : vector<8x128xf32>
    %cst_108 = arith.constant 5.000000e-01 : f32
    %239 = vector.broadcast %cst_108 : f32 to vector<8x128xf32>
    %240 = arith.addf %238, %239 : vector<8x128xf32>
    %241 = arith.select %5, %236, %240 : vector<8x128xi1>, vector<8x128xf32>
    %c64_i32_109 = arith.constant 64 : i32
    %242 = tpu.dynamic_rotate %241 by %c64_i32_109 dim 1 : vector<8x128xf32>, i32 -> vector<8x128xf32>
    %c32_i32_110 = arith.constant 32 : i32
    %243 = tpu.dynamic_rotate %241 by %c32_i32_110 dim 1 : vector<8x128xf32>, i32 -> vector<8x128xf32>
    %c96_i32_111 = arith.constant 96 : i32
    %244 = tpu.dynamic_rotate %241 by %c96_i32_111 dim 1 : vector<8x128xf32>, i32 -> vector<8x128xf32>
    %245 = arith.mulf %243, %220 : vector<8x128xf32>
    %246 = arith.mulf %242, %241 : vector<8x128xf32>
    %247 = arith.addf %245, %246 : vector<8x128xf32>
    %cst_112 = arith.constant 0.000000e+00 : f32
    %248 = vector.broadcast %cst_112 : f32 to vector<8x128xf32>
    %249 = arith.select %5, %247, %248 : vector<8x128xi1>, vector<8x128xf32>
    %250 = math.tanh %249 : vector<8x128xf32>
    %251 = arith.mulf %244, %250 : vector<8x128xf32>
    %252 = arith.index_cast %c7_i32 : i32 to index
    %c0_113 = arith.constant 0 : index
    %c0_114 = arith.constant 0 : index
    %253 = vector.load %arg9[%252, %c0_113, %c0_114] : memref<8x8x128xf32, #tpu.memory_space<vmem>>, vector<1x8x128xf32>
    %254 = vector.shape_cast %253 : vector<1x8x128xf32> to vector<8x128xf32>
    %255 = vector.shape_cast %251 : vector<8x128xf32> to vector<1x8x128xf32>
    tpu.vector_store %arg9[%252, %c0_113, %c0_114], %255 {strides = array<i32>} : memref<8x8x128xf32, #tpu.memory_space<vmem>>, vector<1x8x128xf32>,
    %c8_i32 = arith.constant 8 : i32
    %c0_115 = arith.constant 0 : index
    %c0_116 = arith.constant 0 : index
    %c0_117 = arith.constant 0 : index
    %256 = vector.load %arg9[%c0_115, %c0_116, %c0_117] : memref<8x8x128xf32, #tpu.memory_space<vmem>>, vector<8x8x128xf32>
    %257 = vector.shape_cast %256 : vector<8x8x128xf32> to vector<64x128xf32>
    %258 = arith.truncf %257 : vector<64x128xf32> to vector<64x128xbf16>
    %c1 = arith.constant 1 : index
    %c0_118 = arith.constant 0 : index
    %c0_119 = arith.constant 0 : index
    %259 = vector.load %arg1[%c1, %c0_118, %c0_119] : memref<2x128x128xbf16, #tpu.memory_space<vmem>>, vector<1x128x128xbf16>
    %260 = vector.shape_cast %259 : vector<1x128x128xbf16> to vector<128x128xbf16>
    %cst_120 = arith.constant dense<0.000000e+00> : vector<64x128xf32>
    %261 = tpu.matmul %258, %260, %cst_120 {dimension_numbers = #tpu.dot_dimension_numbers<[1], [0], [0], [1], [0, 0, 1, 1], [], []>} : vector<64x128xbf16>, vector<128x128xbf16>, vector<64x128xf32> -> vector<64x128xf32>
    %c1_121 = arith.constant 1 : index
    %c0_122 = arith.constant 0 : index
    %c0_123 = arith.constant 0 : index
    %262 = vector.load %arg3[%c1_121, %c0_122, %c0_123] : memref<2x1x128xf32, #tpu.memory_space<vmem>>, vector<1x1x128xf32>
    %263 = vector.shape_cast %262 : vector<1x1x128xf32> to vector<1x128xf32>
    %264 = vector.broadcast %263 : vector<1x128xf32> to vector<64x128xf32>
    %265 = arith.addf %261, %264 : vector<64x128xf32>
    %266 = vector.shape_cast %265 : vector<64x128xf32> to vector<8x8x128xf32>
    %c0_124 = arith.constant 0 : index
    %c0_125 = arith.constant 0 : index
    %c0_126 = arith.constant 0 : index
    %267 = vector.load %arg10[%c0_124, %c0_125, %c0_126] : memref<8x8x128xf32, #tpu.memory_space<vmem>>, vector<8x8x128xf32>
    tpu.vector_store %arg10[%c0_124, %c0_125, %c0_126], %266 {strides = array<i32>} : memref<8x8x128xf32, #tpu.memory_space<vmem>>, vector<8x8x128xf32>,
    %c1_127 = arith.constant 1 : index
    %c0_128 = arith.constant 0 : index
    %c0_129 = arith.constant 0 : index
    %268 = vector.load %arg2[%c1_127, %c0_128, %c0_129] : memref<2x128x128xbf16, #tpu.memory_space<vmem>>, vector<1x128x128xbf16>
    %269 = vector.shape_cast %268 : vector<1x128x128xbf16> to vector<128x128xbf16>
    %c1_130 = arith.constant 1 : index
    %c0_131 = arith.constant 0 : index
    %c0_132 = arith.constant 0 : index
    %270 = vector.load %arg4[%c1_130, %c0_131, %c0_132] : memref<2x8x128xf32, #tpu.memory_space<vmem>>, vector<1x8x128xf32>
    %271 = vector.shape_cast %270 : vector<1x8x128xf32> to vector<8x128xf32>
    %c1_133 = arith.constant 1 : index
    %c0_134 = arith.constant 0 : index
    %c0_135 = arith.constant 0 : index
    %272 = vector.load %arg5[%c1_133, %c0_134, %c0_135] : memref<2x8x128xf32, #tpu.memory_space<vmem>>, vector<1x8x128xf32>
    %273 = vector.shape_cast %272 : vector<1x8x128xf32> to vector<8x128xf32>
    %c0_i32_136 = arith.constant 0 : i32
    %274 = arith.index_cast %c0_i32_136 : i32 to index
    %c0_137 = arith.constant 0 : index
    %c0_138 = arith.constant 0 : index
    %275 = vector.load %arg10[%274, %c0_137, %c0_138] : memref<8x8x128xf32, #tpu.memory_space<vmem>>, vector<1x8x128xf32>
    %276 = vector.shape_cast %275 : vector<1x8x128xf32> to vector<8x128xf32>
    %277 = arith.truncf %271 : vector<8x128xf32> to vector<8x128xbf16>
    %cst_139 = arith.constant dense<0.000000e+00> : vector<8x128xf32>
    %278 = tpu.matmul %277, %269, %cst_139 {dimension_numbers = #tpu.dot_dimension_numbers<[1], [0], [0], [1], [0, 0, 1, 1], [], []>} : vector<8x128xbf16>, vector<128x128xbf16>, vector<8x128xf32> -> vector<8x128xf32>
    %279 = arith.addf %276, %278 : vector<8x128xf32>
    %cst_140 = arith.constant 5.000000e-01 : f32
    %280 = vector.broadcast %cst_140 : f32 to vector<8x128xf32>
    %281 = arith.mulf %280, %279 : vector<8x128xf32>
    %282 = arith.select %5, %279, %281 : vector<8x128xi1>, vector<8x128xf32>
    %283 = math.tanh %282 : vector<8x128xf32>
    %cst_141 = arith.constant 5.000000e-01 : f32
    %284 = vector.broadcast %cst_141 : f32 to vector<8x128xf32>
    %285 = arith.mulf %284, %283 : vector<8x128xf32>
    %cst_142 = arith.constant 5.000000e-01 : f32
    %286 = vector.broadcast %cst_142 : f32 to vector<8x128xf32>
    %287 = arith.addf %285, %286 : vector<8x128xf32>
    %288 = arith.select %5, %283, %287 : vector<8x128xi1>, vector<8x128xf32>
    %c64_i32_143 = arith.constant 64 : i32
    %289 = tpu.dynamic_rotate %288 by %c64_i32_143 dim 1 : vector<8x128xf32>, i32 -> vector<8x128xf32>
    %c32_i32_144 = arith.constant 32 : i32
    %290 = tpu.dynamic_rotate %288 by %c32_i32_144 dim 1 : vector<8x128xf32>, i32 -> vector<8x128xf32>
    %c96_i32_145 = arith.constant 96 : i32
    %291 = tpu.dynamic_rotate %288 by %c96_i32_145 dim 1 : vector<8x128xf32>, i32 -> vector<8x128xf32>
    %292 = arith.mulf %290, %273 : vector<8x128xf32>
    %293 = arith.mulf %289, %288 : vector<8x128xf32>
    %294 = arith.addf %292, %293 : vector<8x128xf32>
    %cst_146 = arith.constant 0.000000e+00 : f32
    %295 = vector.broadcast %cst_146 : f32 to vector<8x128xf32>
    %296 = arith.select %5, %294, %295 : vector<8x128xi1>, vector<8x128xf32>
    %297 = math.tanh %296 : vector<8x128xf32>
    %298 = arith.mulf %291, %297 : vector<8x128xf32>
    %299 = arith.index_cast %c0_i32_136 : i32 to index
    %c0_147 = arith.constant 0 : index
    %c0_148 = arith.constant 0 : index
    %300 = vector.load %arg10[%299, %c0_147, %c0_148] : memref<8x8x128xf32, #tpu.memory_space<vmem>>, vector<1x8x128xf32>
    %301 = vector.shape_cast %300 : vector<1x8x128xf32> to vector<8x128xf32>
    %302 = vector.shape_cast %298 : vector<8x128xf32> to vector<1x8x128xf32>
    tpu.vector_store %arg10[%299, %c0_147, %c0_148], %302 {strides = array<i32>} : memref<8x8x128xf32, #tpu.memory_space<vmem>>, vector<1x8x128xf32>,
    %c1_i32_149 = arith.constant 1 : i32
    %303 = arith.index_cast %c1_i32_149 : i32 to index
    %c0_150 = arith.constant 0 : index
    %c0_151 = arith.constant 0 : index
    %304 = vector.load %arg10[%303, %c0_150, %c0_151] : memref<8x8x128xf32, #tpu.memory_space<vmem>>, vector<1x8x128xf32>
    %305 = vector.shape_cast %304 : vector<1x8x128xf32> to vector<8x128xf32>
    %306 = arith.truncf %298 : vector<8x128xf32> to vector<8x128xbf16>
    %cst_152 = arith.constant dense<0.000000e+00> : vector<8x128xf32>
    %307 = tpu.matmul %306, %269, %cst_152 {dimension_numbers = #tpu.dot_dimension_numbers<[1], [0], [0], [1], [0, 0, 1, 1], [], []>} : vector<8x128xbf16>, vector<128x128xbf16>, vector<8x128xf32> -> vector<8x128xf32>
    %308 = arith.addf %305, %307 : vector<8x128xf32>
    %cst_153 = arith.constant 5.000000e-01 : f32
    %309 = vector.broadcast %cst_153 : f32 to vector<8x128xf32>
    %310 = arith.mulf %309, %308 : vector<8x128xf32>
    %311 = arith.select %5, %308, %310 : vector<8x128xi1>, vector<8x128xf32>
    %312 = math.tanh %311 : vector<8x128xf32>
    %cst_154 = arith.constant 5.000000e-01 : f32
    %313 = vector.broadcast %cst_154 : f32 to vector<8x128xf32>
    %314 = arith.mulf %313, %312 : vector<8x128xf32>
    %cst_155 = arith.constant 5.000000e-01 : f32
    %315 = vector.broadcast %cst_155 : f32 to vector<8x128xf32>
    %316 = arith.addf %314, %315 : vector<8x128xf32>
    %317 = arith.select %5, %312, %316 : vector<8x128xi1>, vector<8x128xf32>
    %c64_i32_156 = arith.constant 64 : i32
    %318 = tpu.dynamic_rotate %317 by %c64_i32_156 dim 1 : vector<8x128xf32>, i32 -> vector<8x128xf32>
    %c32_i32_157 = arith.constant 32 : i32
    %319 = tpu.dynamic_rotate %317 by %c32_i32_157 dim 1 : vector<8x128xf32>, i32 -> vector<8x128xf32>
    %c96_i32_158 = arith.constant 96 : i32
    %320 = tpu.dynamic_rotate %317 by %c96_i32_158 dim 1 : vector<8x128xf32>, i32 -> vector<8x128xf32>
    %321 = arith.mulf %319, %296 : vector<8x128xf32>
    %322 = arith.mulf %318, %317 : vector<8x128xf32>
    %323 = arith.addf %321, %322 : vector<8x128xf32>
    %cst_159 = arith.constant 0.000000e+00 : f32
    %324 = vector.broadcast %cst_159 : f32 to vector<8x128xf32>
    %325 = arith.select %5, %323, %324 : vector<8x128xi1>, vector<8x128xf32>
    %326 = math.tanh %325 : vector<8x128xf32>
    %327 = arith.mulf %320, %326 : vector<8x128xf32>
    %328 = arith.index_cast %c1_i32_149 : i32 to index
    %c0_160 = arith.constant 0 : index
    %c0_161 = arith.constant 0 : index
    %329 = vector.load %arg10[%328, %c0_160, %c0_161] : memref<8x8x128xf32, #tpu.memory_space<vmem>>, vector<1x8x128xf32>
    %330 = vector.shape_cast %329 : vector<1x8x128xf32> to vector<8x128xf32>
    %331 = vector.shape_cast %327 : vector<8x128xf32> to vector<1x8x128xf32>
    tpu.vector_store %arg10[%328, %c0_160, %c0_161], %331 {strides = array<i32>} : memref<8x8x128xf32, #tpu.memory_space<vmem>>, vector<1x8x128xf32>,
    %c2_i32_162 = arith.constant 2 : i32
    %332 = arith.index_cast %c2_i32_162 : i32 to index
    %c0_163 = arith.constant 0 : index
    %c0_164 = arith.constant 0 : index
    %333 = vector.load %arg10[%332, %c0_163, %c0_164] : memref<8x8x128xf32, #tpu.memory_space<vmem>>, vector<1x8x128xf32>
    %334 = vector.shape_cast %333 : vector<1x8x128xf32> to vector<8x128xf32>
    %335 = arith.truncf %327 : vector<8x128xf32> to vector<8x128xbf16>
    %cst_165 = arith.constant dense<0.000000e+00> : vector<8x128xf32>
    %336 = tpu.matmul %335, %269, %cst_165 {dimension_numbers = #tpu.dot_dimension_numbers<[1], [0], [0], [1], [0, 0, 1, 1], [], []>} : vector<8x128xbf16>, vector<128x128xbf16>, vector<8x128xf32> -> vector<8x128xf32>
    %337 = arith.addf %334, %336 : vector<8x128xf32>
    %cst_166 = arith.constant 5.000000e-01 : f32
    %338 = vector.broadcast %cst_166 : f32 to vector<8x128xf32>
    %339 = arith.mulf %338, %337 : vector<8x128xf32>
    %340 = arith.select %5, %337, %339 : vector<8x128xi1>, vector<8x128xf32>
    %341 = math.tanh %340 : vector<8x128xf32>
    %cst_167 = arith.constant 5.000000e-01 : f32
    %342 = vector.broadcast %cst_167 : f32 to vector<8x128xf32>
    %343 = arith.mulf %342, %341 : vector<8x128xf32>
    %cst_168 = arith.constant 5.000000e-01 : f32
    %344 = vector.broadcast %cst_168 : f32 to vector<8x128xf32>
    %345 = arith.addf %343, %344 : vector<8x128xf32>
    %346 = arith.select %5, %341, %345 : vector<8x128xi1>, vector<8x128xf32>
    %c64_i32_169 = arith.constant 64 : i32
    %347 = tpu.dynamic_rotate %346 by %c64_i32_169 dim 1 : vector<8x128xf32>, i32 -> vector<8x128xf32>
    %c32_i32_170 = arith.constant 32 : i32
    %348 = tpu.dynamic_rotate %346 by %c32_i32_170 dim 1 : vector<8x128xf32>, i32 -> vector<8x128xf32>
    %c96_i32_171 = arith.constant 96 : i32
    %349 = tpu.dynamic_rotate %346 by %c96_i32_171 dim 1 : vector<8x128xf32>, i32 -> vector<8x128xf32>
    %350 = arith.mulf %348, %325 : vector<8x128xf32>
    %351 = arith.mulf %347, %346 : vector<8x128xf32>
    %352 = arith.addf %350, %351 : vector<8x128xf32>
    %cst_172 = arith.constant 0.000000e+00 : f32
    %353 = vector.broadcast %cst_172 : f32 to vector<8x128xf32>
    %354 = arith.select %5, %352, %353 : vector<8x128xi1>, vector<8x128xf32>
    %355 = math.tanh %354 : vector<8x128xf32>
    %356 = arith.mulf %349, %355 : vector<8x128xf32>
    %357 = arith.index_cast %c2_i32_162 : i32 to index
    %c0_173 = arith.constant 0 : index
    %c0_174 = arith.constant 0 : index
    %358 = vector.load %arg10[%357, %c0_173, %c0_174] : memref<8x8x128xf32, #tpu.memory_space<vmem>>, vector<1x8x128xf32>
    %359 = vector.shape_cast %358 : vector<1x8x128xf32> to vector<8x128xf32>
    %360 = vector.shape_cast %356 : vector<8x128xf32> to vector<1x8x128xf32>
    tpu.vector_store %arg10[%357, %c0_173, %c0_174], %360 {strides = array<i32>} : memref<8x8x128xf32, #tpu.memory_space<vmem>>, vector<1x8x128xf32>,
    %c3_i32_175 = arith.constant 3 : i32
    %361 = arith.index_cast %c3_i32_175 : i32 to index
    %c0_176 = arith.constant 0 : index
    %c0_177 = arith.constant 0 : index
    %362 = vector.load %arg10[%361, %c0_176, %c0_177] : memref<8x8x128xf32, #tpu.memory_space<vmem>>, vector<1x8x128xf32>
    %363 = vector.shape_cast %362 : vector<1x8x128xf32> to vector<8x128xf32>
    %364 = arith.truncf %356 : vector<8x128xf32> to vector<8x128xbf16>
    %cst_178 = arith.constant dense<0.000000e+00> : vector<8x128xf32>
    %365 = tpu.matmul %364, %269, %cst_178 {dimension_numbers = #tpu.dot_dimension_numbers<[1], [0], [0], [1], [0, 0, 1, 1], [], []>} : vector<8x128xbf16>, vector<128x128xbf16>, vector<8x128xf32> -> vector<8x128xf32>
    %366 = arith.addf %363, %365 : vector<8x128xf32>
    %cst_179 = arith.constant 5.000000e-01 : f32
    %367 = vector.broadcast %cst_179 : f32 to vector<8x128xf32>
    %368 = arith.mulf %367, %366 : vector<8x128xf32>
    %369 = arith.select %5, %366, %368 : vector<8x128xi1>, vector<8x128xf32>
    %370 = math.tanh %369 : vector<8x128xf32>
    %cst_180 = arith.constant 5.000000e-01 : f32
    %371 = vector.broadcast %cst_180 : f32 to vector<8x128xf32>
    %372 = arith.mulf %371, %370 : vector<8x128xf32>
    %cst_181 = arith.constant 5.000000e-01 : f32
    %373 = vector.broadcast %cst_181 : f32 to vector<8x128xf32>
    %374 = arith.addf %372, %373 : vector<8x128xf32>
    %375 = arith.select %5, %370, %374 : vector<8x128xi1>, vector<8x128xf32>
    %c64_i32_182 = arith.constant 64 : i32
    %376 = tpu.dynamic_rotate %375 by %c64_i32_182 dim 1 : vector<8x128xf32>, i32 -> vector<8x128xf32>
    %c32_i32_183 = arith.constant 32 : i32
    %377 = tpu.dynamic_rotate %375 by %c32_i32_183 dim 1 : vector<8x128xf32>, i32 -> vector<8x128xf32>
    %c96_i32_184 = arith.constant 96 : i32
    %378 = tpu.dynamic_rotate %375 by %c96_i32_184 dim 1 : vector<8x128xf32>, i32 -> vector<8x128xf32>
    %379 = arith.mulf %377, %354 : vector<8x128xf32>
    %380 = arith.mulf %376, %375 : vector<8x128xf32>
    %381 = arith.addf %379, %380 : vector<8x128xf32>
    %cst_185 = arith.constant 0.000000e+00 : f32
    %382 = vector.broadcast %cst_185 : f32 to vector<8x128xf32>
    %383 = arith.select %5, %381, %382 : vector<8x128xi1>, vector<8x128xf32>
    %384 = math.tanh %383 : vector<8x128xf32>
    %385 = arith.mulf %378, %384 : vector<8x128xf32>
    %386 = arith.index_cast %c3_i32_175 : i32 to index
    %c0_186 = arith.constant 0 : index
    %c0_187 = arith.constant 0 : index
    %387 = vector.load %arg10[%386, %c0_186, %c0_187] : memref<8x8x128xf32, #tpu.memory_space<vmem>>, vector<1x8x128xf32>
    %388 = vector.shape_cast %387 : vector<1x8x128xf32> to vector<8x128xf32>
    %389 = vector.shape_cast %385 : vector<8x128xf32> to vector<1x8x128xf32>
    tpu.vector_store %arg10[%386, %c0_186, %c0_187], %389 {strides = array<i32>} : memref<8x8x128xf32, #tpu.memory_space<vmem>>, vector<1x8x128xf32>,
    %c4_i32_188 = arith.constant 4 : i32
    %390 = arith.index_cast %c4_i32_188 : i32 to index
    %c0_189 = arith.constant 0 : index
    %c0_190 = arith.constant 0 : index
    %391 = vector.load %arg10[%390, %c0_189, %c0_190] : memref<8x8x128xf32, #tpu.memory_space<vmem>>, vector<1x8x128xf32>
    %392 = vector.shape_cast %391 : vector<1x8x128xf32> to vector<8x128xf32>
    %393 = arith.truncf %385 : vector<8x128xf32> to vector<8x128xbf16>
    %cst_191 = arith.constant dense<0.000000e+00> : vector<8x128xf32>
    %394 = tpu.matmul %393, %269, %cst_191 {dimension_numbers = #tpu.dot_dimension_numbers<[1], [0], [0], [1], [0, 0, 1, 1], [], []>} : vector<8x128xbf16>, vector<128x128xbf16>, vector<8x128xf32> -> vector<8x128xf32>
    %395 = arith.addf %392, %394 : vector<8x128xf32>
    %cst_192 = arith.constant 5.000000e-01 : f32
    %396 = vector.broadcast %cst_192 : f32 to vector<8x128xf32>
    %397 = arith.mulf %396, %395 : vector<8x128xf32>
    %398 = arith.select %5, %395, %397 : vector<8x128xi1>, vector<8x128xf32>
    %399 = math.tanh %398 : vector<8x128xf32>
    %cst_193 = arith.constant 5.000000e-01 : f32
    %400 = vector.broadcast %cst_193 : f32 to vector<8x128xf32>
    %401 = arith.mulf %400, %399 : vector<8x128xf32>
    %cst_194 = arith.constant 5.000000e-01 : f32
    %402 = vector.broadcast %cst_194 : f32 to vector<8x128xf32>
    %403 = arith.addf %401, %402 : vector<8x128xf32>
    %404 = arith.select %5, %399, %403 : vector<8x128xi1>, vector<8x128xf32>
    %c64_i32_195 = arith.constant 64 : i32
    %405 = tpu.dynamic_rotate %404 by %c64_i32_195 dim 1 : vector<8x128xf32>, i32 -> vector<8x128xf32>
    %c32_i32_196 = arith.constant 32 : i32
    %406 = tpu.dynamic_rotate %404 by %c32_i32_196 dim 1 : vector<8x128xf32>, i32 -> vector<8x128xf32>
    %c96_i32_197 = arith.constant 96 : i32
    %407 = tpu.dynamic_rotate %404 by %c96_i32_197 dim 1 : vector<8x128xf32>, i32 -> vector<8x128xf32>
    %408 = arith.mulf %406, %383 : vector<8x128xf32>
    %409 = arith.mulf %405, %404 : vector<8x128xf32>
    %410 = arith.addf %408, %409 : vector<8x128xf32>
    %cst_198 = arith.constant 0.000000e+00 : f32
    %411 = vector.broadcast %cst_198 : f32 to vector<8x128xf32>
    %412 = arith.select %5, %410, %411 : vector<8x128xi1>, vector<8x128xf32>
    %413 = math.tanh %412 : vector<8x128xf32>
    %414 = arith.mulf %407, %413 : vector<8x128xf32>
    %415 = arith.index_cast %c4_i32_188 : i32 to index
    %c0_199 = arith.constant 0 : index
    %c0_200 = arith.constant 0 : index
    %416 = vector.load %arg10[%415, %c0_199, %c0_200] : memref<8x8x128xf32, #tpu.memory_space<vmem>>, vector<1x8x128xf32>
    %417 = vector.shape_cast %416 : vector<1x8x128xf32> to vector<8x128xf32>
    %418 = vector.shape_cast %414 : vector<8x128xf32> to vector<1x8x128xf32>
    tpu.vector_store %arg10[%415, %c0_199, %c0_200], %418 {strides = array<i32>} : memref<8x8x128xf32, #tpu.memory_space<vmem>>, vector<1x8x128xf32>,
    %c5_i32_201 = arith.constant 5 : i32
    %419 = arith.index_cast %c5_i32_201 : i32 to index
    %c0_202 = arith.constant 0 : index
    %c0_203 = arith.constant 0 : index
    %420 = vector.load %arg10[%419, %c0_202, %c0_203] : memref<8x8x128xf32, #tpu.memory_space<vmem>>, vector<1x8x128xf32>
    %421 = vector.shape_cast %420 : vector<1x8x128xf32> to vector<8x128xf32>
    %422 = arith.truncf %414 : vector<8x128xf32> to vector<8x128xbf16>
    %cst_204 = arith.constant dense<0.000000e+00> : vector<8x128xf32>
    %423 = tpu.matmul %422, %269, %cst_204 {dimension_numbers = #tpu.dot_dimension_numbers<[1], [0], [0], [1], [0, 0, 1, 1], [], []>} : vector<8x128xbf16>, vector<128x128xbf16>, vector<8x128xf32> -> vector<8x128xf32>
    %424 = arith.addf %421, %423 : vector<8x128xf32>
    %cst_205 = arith.constant 5.000000e-01 : f32
    %425 = vector.broadcast %cst_205 : f32 to vector<8x128xf32>
    %426 = arith.mulf %425, %424 : vector<8x128xf32>
    %427 = arith.select %5, %424, %426 : vector<8x128xi1>, vector<8x128xf32>
    %428 = math.tanh %427 : vector<8x128xf32>
    %cst_206 = arith.constant 5.000000e-01 : f32
    %429 = vector.broadcast %cst_206 : f32 to vector<8x128xf32>
    %430 = arith.mulf %429, %428 : vector<8x128xf32>
    %cst_207 = arith.constant 5.000000e-01 : f32
    %431 = vector.broadcast %cst_207 : f32 to vector<8x128xf32>
    %432 = arith.addf %430, %431 : vector<8x128xf32>
    %433 = arith.select %5, %428, %432 : vector<8x128xi1>, vector<8x128xf32>
    %c64_i32_208 = arith.constant 64 : i32
    %434 = tpu.dynamic_rotate %433 by %c64_i32_208 dim 1 : vector<8x128xf32>, i32 -> vector<8x128xf32>
    %c32_i32_209 = arith.constant 32 : i32
    %435 = tpu.dynamic_rotate %433 by %c32_i32_209 dim 1 : vector<8x128xf32>, i32 -> vector<8x128xf32>
    %c96_i32_210 = arith.constant 96 : i32
    %436 = tpu.dynamic_rotate %433 by %c96_i32_210 dim 1 : vector<8x128xf32>, i32 -> vector<8x128xf32>
    %437 = arith.mulf %435, %412 : vector<8x128xf32>
    %438 = arith.mulf %434, %433 : vector<8x128xf32>
    %439 = arith.addf %437, %438 : vector<8x128xf32>
    %cst_211 = arith.constant 0.000000e+00 : f32
    %440 = vector.broadcast %cst_211 : f32 to vector<8x128xf32>
    %441 = arith.select %5, %439, %440 : vector<8x128xi1>, vector<8x128xf32>
    %442 = math.tanh %441 : vector<8x128xf32>
    %443 = arith.mulf %436, %442 : vector<8x128xf32>
    %444 = arith.index_cast %c5_i32_201 : i32 to index
    %c0_212 = arith.constant 0 : index
    %c0_213 = arith.constant 0 : index
    %445 = vector.load %arg10[%444, %c0_212, %c0_213] : memref<8x8x128xf32, #tpu.memory_space<vmem>>, vector<1x8x128xf32>
    %446 = vector.shape_cast %445 : vector<1x8x128xf32> to vector<8x128xf32>
    %447 = vector.shape_cast %443 : vector<8x128xf32> to vector<1x8x128xf32>
    tpu.vector_store %arg10[%444, %c0_212, %c0_213], %447 {strides = array<i32>} : memref<8x8x128xf32, #tpu.memory_space<vmem>>, vector<1x8x128xf32>,
    %c6_i32_214 = arith.constant 6 : i32
    %448 = arith.index_cast %c6_i32_214 : i32 to index
    %c0_215 = arith.constant 0 : index
    %c0_216 = arith.constant 0 : index
    %449 = vector.load %arg10[%448, %c0_215, %c0_216] : memref<8x8x128xf32, #tpu.memory_space<vmem>>, vector<1x8x128xf32>
    %450 = vector.shape_cast %449 : vector<1x8x128xf32> to vector<8x128xf32>
    %451 = arith.truncf %443 : vector<8x128xf32> to vector<8x128xbf16>
    %cst_217 = arith.constant dense<0.000000e+00> : vector<8x128xf32>
    %452 = tpu.matmul %451, %269, %cst_217 {dimension_numbers = #tpu.dot_dimension_numbers<[1], [0], [0], [1], [0, 0, 1, 1], [], []>} : vector<8x128xbf16>, vector<128x128xbf16>, vector<8x128xf32> -> vector<8x128xf32>
    %453 = arith.addf %450, %452 : vector<8x128xf32>
    %cst_218 = arith.constant 5.000000e-01 : f32
    %454 = vector.broadcast %cst_218 : f32 to vector<8x128xf32>
    %455 = arith.mulf %454, %453 : vector<8x128xf32>
    %456 = arith.select %5, %453, %455 : vector<8x128xi1>, vector<8x128xf32>
    %457 = math.tanh %456 : vector<8x128xf32>
    %cst_219 = arith.constant 5.000000e-01 : f32
    %458 = vector.broadcast %cst_219 : f32 to vector<8x128xf32>
    %459 = arith.mulf %458, %457 : vector<8x128xf32>
    %cst_220 = arith.constant 5.000000e-01 : f32
    %460 = vector.broadcast %cst_220 : f32 to vector<8x128xf32>
    %461 = arith.addf %459, %460 : vector<8x128xf32>
    %462 = arith.select %5, %457, %461 : vector<8x128xi1>, vector<8x128xf32>
    %c64_i32_221 = arith.constant 64 : i32
    %463 = tpu.dynamic_rotate %462 by %c64_i32_221 dim 1 : vector<8x128xf32>, i32 -> vector<8x128xf32>
    %c32_i32_222 = arith.constant 32 : i32
    %464 = tpu.dynamic_rotate %462 by %c32_i32_222 dim 1 : vector<8x128xf32>, i32 -> vector<8x128xf32>
    %c96_i32_223 = arith.constant 96 : i32
    %465 = tpu.dynamic_rotate %462 by %c96_i32_223 dim 1 : vector<8x128xf32>, i32 -> vector<8x128xf32>
    %466 = arith.mulf %464, %441 : vector<8x128xf32>
    %467 = arith.mulf %463, %462 : vector<8x128xf32>
    %468 = arith.addf %466, %467 : vector<8x128xf32>
    %cst_224 = arith.constant 0.000000e+00 : f32
    %469 = vector.broadcast %cst_224 : f32 to vector<8x128xf32>
    %470 = arith.select %5, %468, %469 : vector<8x128xi1>, vector<8x128xf32>
    %471 = math.tanh %470 : vector<8x128xf32>
    %472 = arith.mulf %465, %471 : vector<8x128xf32>
    %473 = arith.index_cast %c6_i32_214 : i32 to index
    %c0_225 = arith.constant 0 : index
    %c0_226 = arith.constant 0 : index
    %474 = vector.load %arg10[%473, %c0_225, %c0_226] : memref<8x8x128xf32, #tpu.memory_space<vmem>>, vector<1x8x128xf32>
    %475 = vector.shape_cast %474 : vector<1x8x128xf32> to vector<8x128xf32>
    %476 = vector.shape_cast %472 : vector<8x128xf32> to vector<1x8x128xf32>
    tpu.vector_store %arg10[%473, %c0_225, %c0_226], %476 {strides = array<i32>} : memref<8x8x128xf32, #tpu.memory_space<vmem>>, vector<1x8x128xf32>,
    %c7_i32_227 = arith.constant 7 : i32
    %477 = arith.index_cast %c7_i32_227 : i32 to index
    %c0_228 = arith.constant 0 : index
    %c0_229 = arith.constant 0 : index
    %478 = vector.load %arg10[%477, %c0_228, %c0_229] : memref<8x8x128xf32, #tpu.memory_space<vmem>>, vector<1x8x128xf32>
    %479 = vector.shape_cast %478 : vector<1x8x128xf32> to vector<8x128xf32>
    %480 = arith.truncf %472 : vector<8x128xf32> to vector<8x128xbf16>
    %cst_230 = arith.constant dense<0.000000e+00> : vector<8x128xf32>
    %481 = tpu.matmul %480, %269, %cst_230 {dimension_numbers = #tpu.dot_dimension_numbers<[1], [0], [0], [1], [0, 0, 1, 1], [], []>} : vector<8x128xbf16>, vector<128x128xbf16>, vector<8x128xf32> -> vector<8x128xf32>
    %482 = arith.addf %479, %481 : vector<8x128xf32>
    %cst_231 = arith.constant 5.000000e-01 : f32
    %483 = vector.broadcast %cst_231 : f32 to vector<8x128xf32>
    %484 = arith.mulf %483, %482 : vector<8x128xf32>
    %485 = arith.select %5, %482, %484 : vector<8x128xi1>, vector<8x128xf32>
    %486 = math.tanh %485 : vector<8x128xf32>
    %cst_232 = arith.constant 5.000000e-01 : f32
    %487 = vector.broadcast %cst_232 : f32 to vector<8x128xf32>
    %488 = arith.mulf %487, %486 : vector<8x128xf32>
    %cst_233 = arith.constant 5.000000e-01 : f32
    %489 = vector.broadcast %cst_233 : f32 to vector<8x128xf32>
    %490 = arith.addf %488, %489 : vector<8x128xf32>
    %491 = arith.select %5, %486, %490 : vector<8x128xi1>, vector<8x128xf32>
    %c64_i32_234 = arith.constant 64 : i32
    %492 = tpu.dynamic_rotate %491 by %c64_i32_234 dim 1 : vector<8x128xf32>, i32 -> vector<8x128xf32>
    %c32_i32_235 = arith.constant 32 : i32
    %493 = tpu.dynamic_rotate %491 by %c32_i32_235 dim 1 : vector<8x128xf32>, i32 -> vector<8x128xf32>
    %c96_i32_236 = arith.constant 96 : i32
    %494 = tpu.dynamic_rotate %491 by %c96_i32_236 dim 1 : vector<8x128xf32>, i32 -> vector<8x128xf32>
    %495 = arith.mulf %493, %470 : vector<8x128xf32>
    %496 = arith.mulf %492, %491 : vector<8x128xf32>
    %497 = arith.addf %495, %496 : vector<8x128xf32>
    %cst_237 = arith.constant 0.000000e+00 : f32
    %498 = vector.broadcast %cst_237 : f32 to vector<8x128xf32>
    %499 = arith.select %5, %497, %498 : vector<8x128xi1>, vector<8x128xf32>
    %500 = math.tanh %499 : vector<8x128xf32>
    %501 = arith.mulf %494, %500 : vector<8x128xf32>
    %502 = arith.index_cast %c7_i32_227 : i32 to index
    %c0_238 = arith.constant 0 : index
    %c0_239 = arith.constant 0 : index
    %503 = vector.load %arg10[%502, %c0_238, %c0_239] : memref<8x8x128xf32, #tpu.memory_space<vmem>>, vector<1x8x128xf32>
    %504 = vector.shape_cast %503 : vector<1x8x128xf32> to vector<8x128xf32>
    %505 = vector.shape_cast %501 : vector<8x128xf32> to vector<1x8x128xf32>
    tpu.vector_store %arg10[%502, %c0_238, %c0_239], %505 {strides = array<i32>} : memref<8x8x128xf32, #tpu.memory_space<vmem>>, vector<1x8x128xf32>,
    %c8_i32_240 = arith.constant 8 : i32
    %c4 = arith.constant 4 : index
    %c0_241 = arith.constant 0 : index
    %c0_242 = arith.constant 0 : index
    %506 = vector.load %arg10[%c4, %c0_241, %c0_242] : memref<8x8x128xf32, #tpu.memory_space<vmem>>, vector<4x8x128xf32>
    %c0_243 = arith.constant 0 : index
    %c0_244 = arith.constant 0 : index
    %507 = vector.load %arg6[%c0_243, %c0_244] : memref<1x128xf32, #tpu.memory_space<vmem>>, vector<1x128xf32>
    %508 = vector.shape_cast %507 : vector<1x128xf32> to vector<1x1x128xf32>
    %509 = vector.broadcast %508 : vector<1x1x128xf32> to vector<4x8x128xf32>
    %510 = arith.mulf %506, %509 : vector<4x8x128xf32>
    %cst_245 = arith.constant dense<0.000000e+00> : vector<4x8xf32>
    %511 = vector.multi_reduction <add>, %510, %cst_245 [2] : vector<4x8x128xf32> to vector<4x8xf32>
    %c0_246 = arith.constant 0 : index
    %c0_247 = arith.constant 0 : index
    %512 = memref.load %arg7[%c0_246, %c0_247] : memref<1x1xf32, #tpu.memory_space<smem>>
    %513 = vector.broadcast %512 : f32 to vector<4x8xf32>
    %514 = arith.addf %511, %513 : vector<4x8xf32>
    %c0_248 = arith.constant 0 : index
    %c0_249 = arith.constant 0 : index
    %515 = vector.load %arg8[%c0_248, %c0_249] : memref<4x8xf32, #tpu.memory_space<vmem>>, vector<4x8xf32>
    tpu.vector_store %arg8[%c0_248, %c0_249], %514 {strides = array<i32>} : memref<4x8xf32, #tpu.memory_space<vmem>>, vector<4x8xf32>,
    return
  }
}

</mosaic_0001>

<llo_original>
// kernel: tpu_custom_call.1
$region0: #{tpu_custom_call.1}
  #allocation0 [shape = 'u32[]', space=smem, size = 0x4, offset = 0x4, fixed_abs, tag = 'smem constant byte address 0x4 - core index']
  #allocation1 [shape = 'u32[144,128]{1,0:T(1,128)}', space=vmem, size = 0x12000, scoped, tag = 'internal scratch']
  #allocation2 [shape = 'f32[8,8,128]{2,1,0:T(8,128)}', space=vmem, size = 0x8000, scoped, tag = 'scratch operand']
  #allocation3 [shape = 'f32[8,8,128]{2,1,0:T(8,128)}', space=vmem, size = 0x8000, scoped, tag = 'scratch operand']
  #allocation4 [shape = 'f32[1,1]{1,0:T(1,128)S(6)}', space=smem, size = 0x200, scoped, tag = 'scoped memory for tpu_custom_call.1']
  %s0 = inlined_call_operand.hbm [shape: f32[8,8,128], index: 0, kind: input, shape index: {}]
  %s1 = inlined_call_operand.hbm [shape: bf16[2,128,128], index: 1, kind: input, shape index: {}]
  %s2 = inlined_call_operand.hbm [shape: bf16[2,128,128], index: 2, kind: input, shape index: {}]
  %s3 = inlined_call_operand.vmem [shape: f32[2,1,128], index: 3, kind: input, shape index: {}]
  %s4 = inlined_call_operand.vmem [shape: f32[2,8,128], index: 4, kind: input, shape index: {}]
  %s5 = inlined_call_operand.hbm [shape: f32[2,8,128], index: 5, kind: input, shape index: {}]
  %s6 = inlined_call_operand.vmem [shape: f32[1,128], index: 6, kind: input, shape index: {}]
  %s7 = inlined_call_operand.<no memory space> [shape: f32[1,1], index: 7, kind: input, shape index: {}]
  %s8 = inlined_call_operand.hbm [shape: f32[4,8], index: 8, kind: output, shape index: {}]
  %s9 = sld [smem:[#allocation0]]
  $region58: #{tpu_custom_call.1} parent=0
    _
  %s11 = ssub.s32 1, %s9
  %s12 = scalar_select 0, %s11, %s9
  %13 = sst [smem:[#allocation4]] %s7
  $region1: #{tpu_custom_call.1} parent=0
    #allocation5 [shape = 'u8[32768]{0}', space=vmem, size = 0x8000, scoped, tag = 'input window, operand 0, single buffered']
    #allocation6 [shape = 's32[1]{0}', space=sflag, size = 0x4, scoped, tag = 'scoped memory for tpu_custom_call.1']
    #allocation7 [shape = 's32[1]{0}', space=sflag, size = 0x4, scoped, tag = 'scoped memory for tpu_custom_call.1']
    #allocation8 [shape = 'u8[65536]{0}', space=vmem, size = 0x10000, scoped, tag = 'input window, operand 1, single buffered']
    #allocation9 [shape = 's32[1]{0}', space=sflag, size = 0x4, scoped, tag = 'scoped memory for tpu_custom_call.1']
    #allocation10 [shape = 'u8[65536]{0}', space=vmem, size = 0x10000, scoped, tag = 'input window, operand 2, single buffered']
    #allocation11 [shape = 'u8[8192]{0}', space=vmem, size = 0x2000, scoped, tag = 'input window, operand 5, single buffered']
    #allocation12 [shape = 's32[1]{0}', space=sflag, size = 0x4, scoped, tag = 'scoped memory for tpu_custom_call.1']
    #allocation13 [shape = 'u8[2048]{0}', space=vmem, size = 0x800, scoped, tag = 'output window, operand 0, single buffered']
    %14 = vsyncpa [#allocation6], 0
    %15 = vsyncpa [#allocation9], 0
    %16 = vsyncpa [#allocation12], 0
    %17 = vsyncpa [#allocation7], 0
    // Predicated region
    $region2: #{tpu_custom_call.1} parent=1 // pred_check
      _
    $region3: #{tpu_custom_call.1} parent=1 // pred_check_branch
      %19 = sbr.rel (0) target = $region5
    $region4: #{tpu_custom_call.1} parent=1 // pred_region
      %s21 = ssub.s32 1024, 1024
      %22 = vsyncadd [#allocation6], %s21
      %s23 = sshll.u32 [#allocation5], 4
      %s24 = int_to_ptr.vmem [resolvable:$true] %s23
      %29 = dma.hbm_to_vmem [thread:$0]  %s0, 1024, %s24, [#allocation6], 128, 128, 8
    $region5: #{tpu_custom_call.1} parent=1 // pred_fallthru
      _
    // Predicated region
    $region6: #{tpu_custom_call.1} parent=1 // pred_check
      _
    $region7: #{tpu_custom_call.1} parent=1 // pred_check_branch
      %31 = sbr.rel (0) target = $region9
    $region8: #{tpu_custom_call.1} parent=1 // pred_region
      %s33 = ssub.s32 2048, 2048
      %34 = vsyncadd [#allocation9], %s33
      %s35 = sshll.u32 [#allocation8], 4
      %s36 = int_to_ptr.vmem [resolvable:$true] %s35
      %41 = dma.hbm_to_vmem [thread:$0]  %s1, 2048, %s36, [#allocation9], 64, 64, 4
    $region9: #{tpu_custom_call.1} parent=1 // pred_fallthru
      _
    // Predicated region
    $region10: #{tpu_custom_call.1} parent=1 // pred_check
      _
    $region11: #{tpu_custom_call.1} parent=1 // pred_check_branch
      %43 = sbr.rel (0) target = $region13
    $region12: #{tpu_custom_call.1} parent=1 // pred_region
      %s45 = ssub.s32 2048, 2048
      %46 = vsyncadd [#allocation9], %s45
      %s47 = sshll.u32 [#allocation10], 4
      %s48 = int_to_ptr.vmem [resolvable:$true] %s47
      %53 = dma.hbm_to_vmem [thread:$0]  %s2, 2048, %s48, [#allocation9], 64, 64, 4
    $region13: #{tpu_custom_call.1} parent=1 // pred_fallthru
      _
    // Predicated region
    $region14: #{tpu_custom_call.1} parent=1 // pred_check
      _
    $region15: #{tpu_custom_call.1} parent=1 // pred_check_branch
      %55 = sbr.rel (0) target = $region17
    $region16: #{tpu_custom_call.1} parent=1 // pred_region
      _
    $region17: #{tpu_custom_call.1} parent=1 // pred_fallthru
      _
    // Predicated region
    $region18: #{tpu_custom_call.1} parent=1 // pred_check
      _
    $region19: #{tpu_custom_call.1} parent=1 // pred_check_branch
      %57 = sbr.rel (0) target = $region21
    $region20: #{tpu_custom_call.1} parent=1 // pred_region
      _
    $region21: #{tpu_custom_call.1} parent=1 // pred_fallthru
      _
    // Predicated region
    $region22: #{tpu_custom_call.1} parent=1 // pred_check
      _
    $region23: #{tpu_custom_call.1} parent=1 // pred_check_branch
      %59 = sbr.rel (0) target = $region25
    $region24: #{tpu_custom_call.1} parent=1 // pred_region
      %s61 = ssub.s32 256, 256
      %62 = vsyncadd [#allocation12], %s61
      %s63 = sshll.u32 [#allocation11], 4
      %s64 = int_to_ptr.vmem [resolvable:$true] %s63
      %69 = dma.hbm_to_vmem [thread:$0]  %s5, 256, %s64, [#allocation12], 128, 128, 8
    $region25: #{tpu_custom_call.1} parent=1 // pred_fallthru
      _
    // Predicated region
    $region26: #{tpu_custom_call.1} parent=1 // pred_check
      _
    $region27: #{tpu_custom_call.1} parent=1 // pred_check_branch
      %71 = sbr.rel (0) target = $region29
    $region28: #{tpu_custom_call.1} parent=1 // pred_region
      _
    $region29: #{tpu_custom_call.1} parent=1 // pred_fallthru
      _
    // Predicated region
    $region30: #{tpu_custom_call.1} parent=1 // pred_check
      _
    $region31: #{tpu_custom_call.1} parent=1 // pred_check_branch
      %73 = sbr.rel (0) target = $region33
    $region32: #{tpu_custom_call.1} parent=1 // pred_region
      _
    $region33: #{tpu_custom_call.1} parent=1 // pred_fallthru
      _
    // Predicated region
    $region34: #{tpu_custom_call.1} parent=1 // pred_check
      _
    $region35: #{tpu_custom_call.1} parent=1 // pred_check_branch
      %75 = sbr.rel (0) target = $region37
    $region36: #{tpu_custom_call.1} parent=1 // pred_region
      %76 = dma.done [#allocation6], 1024
    $region37: #{tpu_custom_call.1} parent=1 // pred_fallthru
      _
    // Predicated region
    $region38: #{tpu_custom_call.1} parent=1 // pred_check
      _
    $region39: #{tpu_custom_call.1} parent=1 // pred_check_branch
      %78 = sbr.rel (0) target = $region41
    $region40: #{tpu_custom_call.1} parent=1 // pred_region
      %79 = dma.done [#allocation9], 2048
    $region41: #{tpu_custom_call.1} parent=1 // pred_fallthru
      _
    // Predicated region
    $region42: #{tpu_custom_call.1} parent=1 // pred_check
      _
    $region43: #{tpu_custom_call.1} parent=1 // pred_check_branch
      %81 = sbr.rel (0) target = $region45
    $region44: #{tpu_custom_call.1} parent=1 // pred_region
      %82 = dma.done [#allocation9], 2048
    $region45: #{tpu_custom_call.1} parent=1 // pred_fallthru
      _
    // Predicated region
    $region46: #{tpu_custom_call.1} parent=1 // pred_check
      _
    $region47: #{tpu_custom_call.1} parent=1 // pred_check_branch
      %84 = sbr.rel (0) target = $region49
    $region48: #{tpu_custom_call.1} parent=1 // pred_region
      %85 = dma.done [#allocation12], 256
    $region49: #{tpu_custom_call.1} parent=1 // pred_fallthru
      _
    %v87 = vlaneseq
    %v88 = vand.u32 %v87, 127
    %vm89 = vcmp.ge.s32.totalorder %v88, 64
    %vm90 = vcmp.lt.s32.totalorder %v88, 96
    %vm91 = vmand %vm89, %vm90
    %v92 = vld [vmem:[#allocation5] sm:$0xff]
    %v93 = vld [vmem:[#allocation5 + $0x8] sm:$0xff]
    %v94 = vld [vmem:[#allocation5 + $0x10] sm:$0xff]
    %v95 = vld [vmem:[#allocation5 + $0x18] sm:$0xff]
    %v96 = vld [vmem:[#allocation5 + $0x20] sm:$0xff]
    %v97 = vld [vmem:[#allocation5 + $0x28] sm:$0xff]
    %v98 = vld [vmem:[#allocation5 + $0x30] sm:$0xff]
    %v99 = vld [vmem:[#allocation5 + $0x38] sm:$0xff]
    %v100 = vpack.c.bf16 %v93, %v92
    %v101 = vpack.c.bf16 %v95, %v94
    %v102 = vpack.c.bf16 %v97, %v96
    %v103 = vpack.c.bf16 %v99, %v98
    %v104 = vld [vmem:[#allocation8] sm:$0xf]
    %v105 = vld [vmem:[#allocation8 + $0x4] sm:$0xf]
    %v106 = vld [vmem:[#allocation8 + $0x8] sm:$0xf]
    %v107 = vld [vmem:[#allocation8 + $0xc] sm:$0xf]
    %v108 = vld [vmem:[#allocation8 + $0x10] sm:$0xf]
    %v109 = vld [vmem:[#allocation8 + $0x14] sm:$0xf]
    %v110 = vld [vmem:[#allocation8 + $0x18] sm:$0xf]
    %v111 = vld [vmem:[#allocation8 + $0x1c] sm:$0xf]
    %v112 = vld [vmem:[#allocation8 + $0x20] sm:$0xf]
    %v113 = vld [vmem:[#allocation8 + $0x24] sm:$0xf]
    %v114 = vld [vmem:[#allocation8 + $0x28] sm:$0xf]
    %v115 = vld [vmem:[#allocation8 + $0x2c] sm:$0xf]
    %v116 = vld [vmem:[#allocation8 + $0x30] sm:$0xf]
    %v117 = vld [vmem:[#allocation8 + $0x34] sm:$0xf]
    %v118 = vld [vmem:[#allocation8 + $0x38] sm:$0xf]
    %v119 = vld [vmem:[#allocation8 + $0x3c] sm:$0xf]
    %v120 = vld [vmem:[%s3] sm:$0x1]
    %v122 = vlaneseq
    %v123 = vshrl.u32 %v122, 7
    %v124 = vsub.s32 0, %v123
    %v125 = vrot.slane %v120, %v124
    %v143 = vunpack.c.l.b16 %v104
    %v144 = vunpack.c.l.b16 %v105
    %v145 = vunpack.c.l.b16 %v106
    %v146 = vunpack.c.l.b16 %v107
    %v147 = vunpack.c.l.b16 %v108
    %v148 = vunpack.c.l.b16 %v109
    %v149 = vunpack.c.l.b16 %v110
    %v150 = vunpack.c.l.b16 %v111
    %v151 = vunpack.c.l.b16 %v112
    %v152 = vunpack.c.l.b16 %v113
    %v153 = vunpack.c.l.b16 %v114
    %v154 = vunpack.c.l.b16 %v115
    %v155 = vunpack.c.l.b16 %v116
    %v156 = vunpack.c.l.b16 %v117
    %v157 = vunpack.c.l.b16 %v118
    %v158 = vunpack.c.l.b16 %v119
    %v159 = vpack.c.b16 %v144, %v143
    %v160 = vpack.c.b16 %v146, %v145
    %v161 = vpack.c.b16 %v148, %v147
    %v162 = vpack.c.b16 %v150, %v149
    %v163 = vpack.c.b16 %v152, %v151
    %v164 = vpack.c.b16 %v154, %v153
    %v165 = vpack.c.b16 %v156, %v155
    %v166 = vpack.c.b16 %v158, %v157
    %175 = vmatprep.subr.bf16.mxu0 0
    %176 = vmatpush1.bf16.msra.mxu0 %v159
    %177 = vmatprep.subr.bf16.mxu0 0
    %178 = vmatpush1.bf16.msra.mxu0 %v160
    %179 = vmatprep.subr.bf16.mxu0 0
    %180 = vmatpush1.bf16.msra.mxu0 %v161
    %181 = vmatprep.subr.bf16.mxu0 0
    %182 = vmatpush1.bf16.msra.mxu0 %v162
    %183 = vmatprep.subr.bf16.mxu0 0
    %184 = vmatpush1.bf16.msra.mxu0 %v163
    %185 = vmatprep.subr.bf16.mxu0 0
    %186 = vmatpush1.bf16.msra.mxu0 %v164
    %187 = vmatprep.subr.bf16.mxu0 0
    %188 = vmatpush1.bf16.msra.mxu0 %v165
    %189 = vmatprep.subr.bf16.mxu0 0
    %190 = vmatpush1.bf16.msra.mxu0 %v166
    %191 = vmatprep.subr.bf16.mxu0 0
    %192 = vmatpush1.bf16.msra.mxu0 0
    %193 = vmatprep.subr.bf16.mxu0 0
    %194 = vmatpush1.bf16.msra.mxu0 0
    %195 = vmatprep.subr.bf16.mxu0 0
    %196 = vmatpush1.bf16.msra.mxu0 0
    %197 = vmatprep.subr.bf16.mxu0 0
    %198 = vmatpush1.bf16.msra.mxu0 0
    %199 = vmatprep.subr.bf16.mxu0 0
    %200 = vmatpush1.bf16.msra.mxu0 0
    %201 = vmatprep.subr.bf16.mxu0 0
    %202 = vmatpush1.bf16.msra.mxu0 0
    %203 = vmatprep.subr.bf16.mxu0 0
    %204 = vmatpush1.bf16.msra.mxu0 0
    %205 = vmatprep.subr.bf16.mxu0 0
    %206 = vmatpush1.bf16.msra.mxu0 0
    %207 = vmatprep.mubr.bf16.mxu0 0
    %208 = vmatmul.mubr.bf16.gmra.mrb[0].mxu0 %v100
    %v209 = vpop.f32.mrb[0].mxu0
    %v210 = vadd.f32 %v125, %v209
    %v211 = vpop.f32.mrb[0].mxu0
    %v212 = vpop.f32.mrb[0].mxu0
    %v213 = vadd.f32 %v125, %v212
    %v214 = vpop.f32.mrb[0].mxu0
    %215 = vmatprep.mubr.bf16.mxu0 0
    %216 = vmatmul.mubr.bf16.gmra.mrb[0].mxu0 %v101
    %v217 = vpop.f32.mrb[0].mxu0
    %v218 = vadd.f32 %v125, %v217
    %v219 = vpop.f32.mrb[0].mxu0
    %v220 = vpop.f32.mrb[0].mxu0
    %v221 = vadd.f32 %v125, %v220
    %v222 = vpop.f32.mrb[0].mxu0
    %223 = vmatprep.mubr.bf16.mxu0 0
    %224 = vmatmul.mubr.bf16.gmra.mrb[0].mxu0 %v102
    %v225 = vpop.f32.mrb[0].mxu0
    %v226 = vadd.f32 %v125, %v225
    %v227 = vpop.f32.mrb[0].mxu0
    %v228 = vpop.f32.mrb[0].mxu0
    %v229 = vadd.f32 %v125, %v228
    %v230 = vpop.f32.mrb[0].mxu0
    %231 = vmatprep.mubr.bf16.mxu0 0
    %232 = vmatmul.mubr.bf16.gmra.mrb[0].mxu0 %v103
    %v233 = vpop.f32.mrb[0].mxu0
    %v234 = vadd.f32 %v125, %v233
    %v235 = vpop.f32.mrb[0].mxu0
    %v236 = vpop.f32.mrb[0].mxu0
    %v237 = vadd.f32 %v125, %v236
    %v238 = vpop.f32.mrb[0].mxu0
    %239 = vdwg.mxu0
    %240 = vst [vmem:[#allocation2] sm:$0xff] %v210
    %241 = vst [vmem:[#allocation2 + $0x8] sm:$0xff] %v213
    %242 = vst [vmem:[#allocation2 + $0x10] sm:$0xff] %v218
    %243 = vst [vmem:[#allocation2 + $0x18] sm:$0xff] %v221
    %244 = vst [vmem:[#allocation2 + $0x20] sm:$0xff] %v226
    %245 = vst [vmem:[#allocation2 + $0x28] sm:$0xff] %v229
    %246 = vst [vmem:[#allocation2 + $0x30] sm:$0xff] %v234
    %247 = vst [vmem:[#allocation2 + $0x38] sm:$0xff] %v237
    %v248 = vld [vmem:[#allocation10] sm:$0xf]
    %v249 = vld [vmem:[#allocation10 + $0x4] sm:$0xf]
    %v250 = vld [vmem:[#allocation10 + $0x8] sm:$0xf]
    %v251 = vld [vmem:[#allocation10 + $0xc] sm:$0xf]
    %v252 = vld [vmem:[#allocation10 + $0x10] sm:$0xf]
    %v253 = vld [vmem:[#allocation10 + $0x14] sm:$0xf]
    %v254 = vld [vmem:[#allocation10 + $0x18] sm:$0xf]
    %v255 = vld [vmem:[#allocation10 + $0x1c] sm:$0xf]
    %v256 = vld [vmem:[#allocation10 + $0x20] sm:$0xf]
    %v257 = vld [vmem:[#allocation10 + $0x24] sm:$0xf]
    %v258 = vld [vmem:[#allocation10 + $0x28] sm:$0xf]
    %v259 = vld [vmem:[#allocation10 + $0x2c] sm:$0xf]
    %v260 = vld [vmem:[#allocation10 + $0x30] sm:$0xf]
    %v261 = vld [vmem:[#allocation10 + $0x34] sm:$0xf]
    %v262 = vld [vmem:[#allocation10 + $0x38] sm:$0xf]
    %v263 = vld [vmem:[#allocation10 + $0x3c] sm:$0xf]
    %v264 = vld [vmem:[%s4] sm:$0xff]
    %v265 = vld [vmem:[#allocation11] sm:$0xff]
    %v266 = vld [vmem:[#allocation2] sm:$0xff]
    %v267 = vpack.c.bf16 %v264, %v264
    %v284 = vunpack.c.l.b16 %v248
    %v285 = vunpack.c.l.b16 %v249
    %v286 = vunpack.c.l.b16 %v250
    %v287 = vunpack.c.l.b16 %v251
    %v288 = vunpack.c.l.b16 %v252
    %v289 = vunpack.c.l.b16 %v253
    %v290 = vunpack.c.l.b16 %v254
    %v291 = vunpack.c.l.b16 %v255
    %v292 = vunpack.c.l.b16 %v256
    %v293 = vunpack.c.l.b16 %v257
    %v294 = vunpack.c.l.b16 %v258
    %v295 = vunpack.c.l.b16 %v259
    %v296 = vunpack.c.l.b16 %v260
    %v297 = vunpack.c.l.b16 %v261
    %v298 = vunpack.c.l.b16 %v262
    %v299 = vunpack.c.l.b16 %v263
    %v300 = vpack.c.b16 %v285, %v284
    %v301 = vpack.c.b16 %v287, %v286
    %v302 = vpack.c.b16 %v289, %v288
    %v303 = vpack.c.b16 %v291, %v290
    %v304 = vpack.c.b16 %v293, %v292
    %v305 = vpack.c.b16 %v295, %v294
    %v306 = vpack.c.b16 %v297, %v296
    %v307 = vpack.c.b16 %v299, %v298
    %316 = vmatprep.subr.bf16.mxu0 0
    %317 = vmatpush1.bf16.msra.mxu0 %v300
    %318 = vmatprep.subr.bf16.mxu0 0
    %319 = vmatpush1.bf16.msra.mxu0 %v301
    %320 = vmatprep.subr.bf16.mxu0 0
    %321 = vmatpush1.bf16.msra.mxu0 %v302
    %322 = vmatprep.subr.bf16.mxu0 0
    %323 = vmatpush1.bf16.msra.mxu0 %v303
    %324 = vmatprep.subr.bf16.mxu0 0
    %325 = vmatpush1.bf16.msra.mxu0 %v304
    %326 = vmatprep.subr.bf16.mxu0 0
    %327 = vmatpush1.bf16.msra.mxu0 %v305
    %328 = vmatprep.subr.bf16.mxu0 0
    %329 = vmatpush1.bf16.msra.mxu0 %v306
    %330 = vmatprep.subr.bf16.mxu0 0
    %331 = vmatpush1.bf16.msra.mxu0 %v307
    %332 = vmatprep.subr.bf16.mxu0 0
    %333 = vmatpush1.bf16.msra.mxu0 0
    %334 = vmatprep.subr.bf16.mxu0 0
    %335 = vmatpush1.bf16.msra.mxu0 0
    %336 = vmatprep.subr.bf16.mxu0 0
    %337 = vmatpush1.bf16.msra.mxu0 0
    %338 = vmatprep.subr.bf16.mxu0 0
    %339 = vmatpush1.bf16.msra.mxu0 0
    %340 = vmatprep.subr.bf16.mxu0 0
    %341 = vmatpush1.bf16.msra.mxu0 0
    %342 = vmatprep.subr.bf16.mxu0 0
    %343 = vmatpush1.bf16.msra.mxu0 0
    %344 = vmatprep.subr.bf16.mxu0 0
    %345 = vmatpush1.bf16.msra.mxu0 0
    %346 = vmatprep.subr.bf16.mxu0 0
    %347 = vmatpush1.bf16.msra.mxu0 0
    %348 = vmatprep.mubr.bf16.mxu0 0
    %349 = vmatmul.mubr.bf16.gmra.mrb[0].mxu0 %v267
    %v350 = vpop.f32.mrb[0].mxu0
    %v351 = vadd.f32 0.0, %v350
    %v352 = vpop.f32.mrb[0].mxu0
    %v353 = vpop.f32.mrb[0].mxu0
    %v354 = vpop.f32.mrb[0].mxu0
    %355 = vdwg.mxu0
    %v356 = vadd.f32 %v266, %v351
    %v357 = vmul.f32 %v356, 0.5
    %v358 = vsel %vm91, %v356, %v357
    %v359 = vtanh.pop %v358
    %v360 = vmul.f32 %v359, 0.5
    %v361 = vadd.f32 %v360, 0.5
    %v362 = vsel %vm91, %v359, %v361
    %363 = vrot.lane.b32.xlu0 %v362, 64
    %v364 = vpop.permute.xlu0 %363
    %365 = vrot.lane.b32.xlu0 %v362, 32
    %v366 = vpop.permute.xlu0 %365
    %367 = vrot.lane.b32.xlu0 %v362, 96
    %v368 = vpop.permute.xlu0 %367
    %v369 = vmul.f32 %v366, %v265
    %v370 = vmul.f32 %v364, %v362
    %v371 = vadd.f32 %v369, %v370
    %v372 = vsel %vm91, %v371, 0.0
    %v373 = vtanh.pop %v372
    %v374 = vmul.f32 %v368, %v373
    %375 = vst [vmem:[#allocation2] sm:$0xff] %v374
    %s376 = scalar_lea.vmem [#allocation2], 8
    %v377 = vld [vmem:[%s376] sm:$0xff]
    %v378 = vpack.c.bf16 %v374, %v374
    %379 = vmatprep.subr.bf16.mxu0 0
    %380 = vmatpush1.bf16.msra.mxu0 %v300
    %381 = vmatprep.subr.bf16.mxu0 0
    %382 = vmatpush1.bf16.msra.mxu0 %v301
    %383 = vmatprep.subr.bf16.mxu0 0
    %384 = vmatpush1.bf16.msra.mxu0 %v302
    %385 = vmatprep.subr.bf16.mxu0 0
    %386 = vmatpush1.bf16.msra.mxu0 %v303
    %387 = vmatprep.subr.bf16.mxu0 0
    %388 = vmatpush1.bf16.msra.mxu0 %v304
    %389 = vmatprep.subr.bf16.mxu0 0
    %390 = vmatpush1.bf16.msra.mxu0 %v305
    %391 = vmatprep.subr.bf16.mxu0 0
    %392 = vmatpush1.bf16.msra.mxu0 %v306
    %393 = vmatprep.subr.bf16.mxu0 0
    %394 = vmatpush1.bf16.msra.mxu0 %v307
    %395 = vmatprep.subr.bf16.mxu0 0
    %396 = vmatpush1.bf16.msra.mxu0 0
    %397 = vmatprep.subr.bf16.mxu0 0
    %398 = vmatpush1.bf16.msra.mxu0 0
    %399 = vmatprep.subr.bf16.mxu0 0
    %400 = vmatpush1.bf16.msra.mxu0 0
    %401 = vmatprep.subr.bf16.mxu0 0
    %402 = vmatpush1.bf16.msra.mxu0 0
    %403 = vmatprep.subr.bf16.mxu0 0
    %404 = vmatpush1.bf16.msra.mxu0 0
    %405 = vmatprep.subr.bf16.mxu0 0
    %406 = vmatpush1.bf16.msra.mxu0 0
    %407 = vmatprep.subr.bf16.mxu0 0
    %408 = vmatpush1.bf16.msra.mxu0 0
    %409 = vmatprep.subr.bf16.mxu0 0
    %410 = vmatpush1.bf16.msra.mxu0 0
    %411 = vmatprep.mubr.bf16.mxu0 0
    %412 = vmatmul.mubr.bf16.gmra.mrb[0].mxu0 %v378
    %v413 = vpop.f32.mrb[0].mxu0
    %v414 = vadd.f32 0.0, %v413
    %v415 = vpop.f32.mrb[0].mxu0
    %v416 = vpop.f32.mrb[0].mxu0
    %v417 = vpop.f32.mrb[0].mxu0
    %418 = vdwg.mxu0
    %v419 = vadd.f32 %v377, %v414
    %v420 = vmul.f32 %v419, 0.5
    %v421 = vsel %vm91, %v419, %v420
    %v422 = vtanh.pop %v421
    %v423 = vmul.f32 %v422, 0.5
    %v424 = vadd.f32 %v423, 0.5
    %v425 = vsel %vm91, %v422, %v424
    %426 = vrot.lane.b32.xlu0 %v425, 64
    %v427 = vpop.permute.xlu0 %426
    %428 = vrot.lane.b32.xlu0 %v425, 32
    %v429 = vpop.permute.xlu0 %428
    %430 = vrot.lane.b32.xlu0 %v425, 96
    %v431 = vpop.permute.xlu0 %430
    %v432 = vmul.f32 %v429, %v372
    %v433 = vmul.f32 %v427, %v425
    %v434 = vadd.f32 %v432, %v433
    %v435 = vsel %vm91, %v434, 0.0
    %v436 = vtanh.pop %v435
    %v437 = vmul.f32 %v431, %v436
    %438 = vst [vmem:[%s376] sm:$0xff] %v437
    %s439 = scalar_lea.vmem [#allocation2], 16
    %v440 = vld [vmem:[%s439] sm:$0xff]
    %v441 = vpack.c.bf16 %v437, %v437
    %442 = vmatprep.subr.bf16.mxu0 0
    %443 = vmatpush1.bf16.msra.mxu0 %v300
    %444 = vmatprep.subr.bf16.mxu0 0
    %445 = vmatpush1.bf16.msra.mxu0 %v301
    %446 = vmatprep.subr.bf16.mxu0 0
    %447 = vmatpush1.bf16.msra.mxu0 %v302
    %448 = vmatprep.subr.bf16.mxu0 0
    %449 = vmatpush1.bf16.msra.mxu0 %v303
    %450 = vmatprep.subr.bf16.mxu0 0
    %451 = vmatpush1.bf16.msra.mxu0 %v304
    %452 = vmatprep.subr.bf16.mxu0 0
    %453 = vmatpush1.bf16.msra.mxu0 %v305
    %454 = vmatprep.subr.bf16.mxu0 0
    %455 = vmatpush1.bf16.msra.mxu0 %v306
    %456 = vmatprep.subr.bf16.mxu0 0
    %457 = vmatpush1.bf16.msra.mxu0 %v307
    %458 = vmatprep.subr.bf16.mxu0 0
    %459 = vmatpush1.bf16.msra.mxu0 0
    %460 = vmatprep.subr.bf16.mxu0 0
    %461 = vmatpush1.bf16.msra.mxu0 0
    %462 = vmatprep.subr.bf16.mxu0 0
    %463 = vmatpush1.bf16.msra.mxu0 0
    %464 = vmatprep.subr.bf16.mxu0 0
    %465 = vmatpush1.bf16.msra.mxu0 0
    %466 = vmatprep.subr.bf16.mxu0 0
    %467 = vmatpush1.bf16.msra.mxu0 0
    %468 = vmatprep.subr.bf16.mxu0 0
    %469 = vmatpush1.bf16.msra.mxu0 0
    %470 = vmatprep.subr.bf16.mxu0 0
    %471 = vmatpush1.bf16.msra.mxu0 0
    %472 = vmatprep.subr.bf16.mxu0 0
    %473 = vmatpush1.bf16.msra.mxu0 0
    %474 = vmatprep.mubr.bf16.mxu0 0
    %475 = vmatmul.mubr.bf16.gmra.mrb[0].mxu0 %v441
    %v476 = vpop.f32.mrb[0].mxu0
    %v477 = vadd.f32 0.0, %v476
    %v478 = vpop.f32.mrb[0].mxu0
    %v479 = vpop.f32.mrb[0].mxu0
    %v480 = vpop.f32.mrb[0].mxu0
    %481 = vdwg.mxu0
    %v482 = vadd.f32 %v440, %v477
    %v483 = vmul.f32 %v482, 0.5
    %v484 = vsel %vm91, %v482, %v483
    %v485 = vtanh.pop %v484
    %v486 = vmul.f32 %v485, 0.5
    %v487 = vadd.f32 %v486, 0.5
    %v488 = vsel %vm91, %v485, %v487
    %489 = vrot.lane.b32.xlu0 %v488, 64
    %v490 = vpop.permute.xlu0 %489
    %491 = vrot.lane.b32.xlu0 %v488, 32
    %v492 = vpop.permute.xlu0 %491
    %493 = vrot.lane.b32.xlu0 %v488, 96
    %v494 = vpop.permute.xlu0 %493
    %v495 = vmul.f32 %v492, %v435
    %v496 = vmul.f32 %v490, %v488
    %v497 = vadd.f32 %v495, %v496
    %v498 = vsel %vm91, %v497, 0.0
    %v499 = vtanh.pop %v498
    %v500 = vmul.f32 %v494, %v499
    %501 = vst [vmem:[%s439] sm:$0xff] %v500
    %s502 = scalar_lea.vmem [#allocation2], 24
    %v503 = vld [vmem:[%s502] sm:$0xff]
    %v504 = vpack.c.bf16 %v500, %v500
    %505 = vmatprep.subr.bf16.mxu0 0
    %506 = vmatpush1.bf16.msra.mxu0 %v300
    %507 = vmatprep.subr.bf16.mxu0 0
    %508 = vmatpush1.bf16.msra.mxu0 %v301
    %509 = vmatprep.subr.bf16.mxu0 0
    %510 = vmatpush1.bf16.msra.mxu0 %v302
    %511 = vmatprep.subr.bf16.mxu0 0
    %512 = vmatpush1.bf16.msra.mxu0 %v303
    %513 = vmatprep.subr.bf16.mxu0 0
    %514 = vmatpush1.bf16.msra.mxu0 %v304
    %515 = vmatprep.subr.bf16.mxu0 0
    %516 = vmatpush1.bf16.msra.mxu0 %v305
    %517 = vmatprep.subr.bf16.mxu0 0
    %518 = vmatpush1.bf16.msra.mxu0 %v306
    %519 = vmatprep.subr.bf16.mxu0 0
    %520 = vmatpush1.bf16.msra.mxu0 %v307
    %521 = vmatprep.subr.bf16.mxu0 0
    %522 = vmatpush1.bf16.msra.mxu0 0
    %523 = vmatprep.subr.bf16.mxu0 0
    %524 = vmatpush1.bf16.msra.mxu0 0
    %525 = vmatprep.subr.bf16.mxu0 0
    %526 = vmatpush1.bf16.msra.mxu0 0
    %527 = vmatprep.subr.bf16.mxu0 0
    %528 = vmatpush1.bf16.msra.mxu0 0
    %529 = vmatprep.subr.bf16.mxu0 0
    %530 = vmatpush1.bf16.msra.mxu0 0
    %531 = vmatprep.subr.bf16.mxu0 0
    %532 = vmatpush1.bf16.msra.mxu0 0
    %533 = vmatprep.subr.bf16.mxu0 0
    %534 = vmatpush1.bf16.msra.mxu0 0
    %535 = vmatprep.subr.bf16.mxu0 0
    %536 = vmatpush1.bf16.msra.mxu0 0
    %537 = vmatprep.mubr.bf16.mxu0 0
    %538 = vmatmul.mubr.bf16.gmra.mrb[0].mxu0 %v504
    %v539 = vpop.f32.mrb[0].mxu0
    %v540 = vadd.f32 0.0, %v539
    %v541 = vpop.f32.mrb[0].mxu0
    %v542 = vpop.f32.mrb[0].mxu0
    %v543 = vpop.f32.mrb[0].mxu0
    %544 = vdwg.mxu0
    %v545 = vadd.f32 %v503, %v540
    %v546 = vmul.f32 %v545, 0.5
    %v547 = vsel %vm91, %v545, %v546
    %v548 = vtanh.pop %v547
    %v549 = vmul.f32 %v548, 0.5
    %v550 = vadd.f32 %v549, 0.5
    %v551 = vsel %vm91, %v548, %v550
    %552 = vrot.lane.b32.xlu0 %v551, 64
    %v553 = vpop.permute.xlu0 %552
    %554 = vrot.lane.b32.xlu0 %v551, 32
    %v555 = vpop.permute.xlu0 %554
    %556 = vrot.lane.b32.xlu0 %v551, 96
    %v557 = vpop.permute.xlu0 %556
    %v558 = vmul.f32 %v555, %v498
    %v559 = vmul.f32 %v553, %v551
    %v560 = vadd.f32 %v558, %v559
    %v561 = vsel %vm91, %v560, 0.0
    %v562 = vtanh.pop %v561
    %v563 = vmul.f32 %v557, %v562
    %564 = vst [vmem:[%s502] sm:$0xff] %v563
    %s565 = scalar_lea.vmem [#allocation2], 32
    %v566 = vld [vmem:[%s565] sm:$0xff]
    %v567 = vpack.c.bf16 %v563, %v563
    %568 = vmatprep.subr.bf16.mxu0 0
    %569 = vmatpush1.bf16.msra.mxu0 %v300
    %570 = vmatprep.subr.bf16.mxu0 0
    %571 = vmatpush1.bf16.msra.mxu0 %v301
    %572 = vmatprep.subr.bf16.mxu0 0
    %573 = vmatpush1.bf16.msra.mxu0 %v302
    %574 = vmatprep.subr.bf16.mxu0 0
    %575 = vmatpush1.bf16.msra.mxu0 %v303
    %576 = vmatprep.subr.bf16.mxu0 0
    %577 = vmatpush1.bf16.msra.mxu0 %v304
    %578 = vmatprep.subr.bf16.mxu0 0
    %579 = vmatpush1.bf16.msra.mxu0 %v305
    %580 = vmatprep.subr.bf16.mxu0 0
    %581 = vmatpush1.bf16.msra.mxu0 %v306
    %582 = vmatprep.subr.bf16.mxu0 0
    %583 = vmatpush1.bf16.msra.mxu0 %v307
    %584 = vmatprep.subr.bf16.mxu0 0
    %585 = vmatpush1.bf16.msra.mxu0 0
    %586 = vmatprep.subr.bf16.mxu0 0
    %587 = vmatpush1.bf16.msra.mxu0 0
    %588 = vmatprep.subr.bf16.mxu0 0
    %589 = vmatpush1.bf16.msra.mxu0 0
    %590 = vmatprep.subr.bf16.mxu0 0
    %591 = vmatpush1.bf16.msra.mxu0 0
    %592 = vmatprep.subr.bf16.mxu0 0
    %593 = vmatpush1.bf16.msra.mxu0 0
    %594 = vmatprep.subr.bf16.mxu0 0
    %595 = vmatpush1.bf16.msra.mxu0 0
    %596 = vmatprep.subr.bf16.mxu0 0
    %597 = vmatpush1.bf16.msra.mxu0 0
    %598 = vmatprep.subr.bf16.mxu0 0
    %599 = vmatpush1.bf16.msra.mxu0 0
    %600 = vmatprep.mubr.bf16.mxu0 0
    %601 = vmatmul.mubr.bf16.gmra.mrb[0].mxu0 %v567
    %v602 = vpop.f32.mrb[0].mxu0
    %v603 = vadd.f32 0.0, %v602
    %v604 = vpop.f32.mrb[0].mxu0
    %v605 = vpop.f32.mrb[0].mxu0
    %v606 = vpop.f32.mrb[0].mxu0
    %607 = vdwg.mxu0
    %v608 = vadd.f32 %v566, %v603
    %v609 = vmul.f32 %v608, 0.5
    %v610 = vsel %vm91, %v608, %v609
    %v611 = vtanh.pop %v610
    %v612 = vmul.f32 %v611, 0.5
    %v613 = vadd.f32 %v612, 0.5
    %v614 = vsel %vm91, %v611, %v613
    %615 = vrot.lane.b32.xlu0 %v614, 64
    %v616 = vpop.permute.xlu0 %615
    %617 = vrot.lane.b32.xlu0 %v614, 32
    %v618 = vpop.permute.xlu0 %617
    %619 = vrot.lane.b32.xlu0 %v614, 96
    %v620 = vpop.permute.xlu0 %619
    %v621 = vmul.f32 %v618, %v561
    %v622 = vmul.f32 %v616, %v614
    %v623 = vadd.f32 %v621, %v622
    %v624 = vsel %vm91, %v623, 0.0
    %v625 = vtanh.pop %v624
    %v626 = vmul.f32 %v620, %v625
    %627 = vst [vmem:[%s565] sm:$0xff] %v626
    %s628 = scalar_lea.vmem [#allocation2], 40
    %v629 = vld [vmem:[%s628] sm:$0xff]
    %v630 = vpack.c.bf16 %v626, %v626
    %631 = vmatprep.subr.bf16.mxu0 0
    %632 = vmatpush1.bf16.msra.mxu0 %v300
    %633 = vmatprep.subr.bf16.mxu0 0
    %634 = vmatpush1.bf16.msra.mxu0 %v301
    %635 = vmatprep.subr.bf16.mxu0 0
    %636 = vmatpush1.bf16.msra.mxu0 %v302
    %637 = vmatprep.subr.bf16.mxu0 0
    %638 = vmatpush1.bf16.msra.mxu0 %v303
    %639 = vmatprep.subr.bf16.mxu0 0
    %640 = vmatpush1.bf16.msra.mxu0 %v304
    %641 = vmatprep.subr.bf16.mxu0 0
    %642 = vmatpush1.bf16.msra.mxu0 %v305
    %643 = vmatprep.subr.bf16.mxu0 0
    %644 = vmatpush1.bf16.msra.mxu0 %v306
    %645 = vmatprep.subr.bf16.mxu0 0
    %646 = vmatpush1.bf16.msra.mxu0 %v307
    %647 = vmatprep.subr.bf16.mxu0 0
    %648 = vmatpush1.bf16.msra.mxu0 0
    %649 = vmatprep.subr.bf16.mxu0 0
    %650 = vmatpush1.bf16.msra.mxu0 0
    %651 = vmatprep.subr.bf16.mxu0 0
    %652 = vmatpush1.bf16.msra.mxu0 0
    %653 = vmatprep.subr.bf16.mxu0 0
    %654 = vmatpush1.bf16.msra.mxu0 0
    %655 = vmatprep.subr.bf16.mxu0 0
    %656 = vmatpush1.bf16.msra.mxu0 0
    %657 = vmatprep.subr.bf16.mxu0 0
    %658 = vmatpush1.bf16.msra.mxu0 0
    %659 = vmatprep.subr.bf16.mxu0 0
    %660 = vmatpush1.bf16.msra.mxu0 0
    %661 = vmatprep.subr.bf16.mxu0 0
    %662 = vmatpush1.bf16.msra.mxu0 0
    %663 = vmatprep.mubr.bf16.mxu0 0
    %664 = vmatmul.mubr.bf16.gmra.mrb[0].mxu0 %v630
    %v665 = vpop.f32.mrb[0].mxu0
    %v666 = vadd.f32 0.0, %v665
    %v667 = vpop.f32.mrb[0].mxu0
    %v668 = vpop.f32.mrb[0].mxu0
    %v669 = vpop.f32.mrb[0].mxu0
    %670 = vdwg.mxu0
    %v671 = vadd.f32 %v629, %v666
    %v672 = vmul.f32 %v671, 0.5
    %v673 = vsel %vm91, %v671, %v672
    %v674 = vtanh.pop %v673
    %v675 = vmul.f32 %v674, 0.5
    %v676 = vadd.f32 %v675, 0.5
    %v677 = vsel %vm91, %v674, %v676
    %678 = vrot.lane.b32.xlu0 %v677, 64
    %v679 = vpop.permute.xlu0 %678
    %680 = vrot.lane.b32.xlu0 %v677, 32
    %v681 = vpop.permute.xlu0 %680
    %682 = vrot.lane.b32.xlu0 %v677, 96
    %v683 = vpop.permute.xlu0 %682
    %v684 = vmul.f32 %v681, %v624
    %v685 = vmul.f32 %v679, %v677
    %v686 = vadd.f32 %v684, %v685
    %v687 = vsel %vm91, %v686, 0.0
    %v688 = vtanh.pop %v687
    %v689 = vmul.f32 %v683, %v688
    %690 = vst [vmem:[%s628] sm:$0xff] %v689
    %s691 = scalar_lea.vmem [#allocation2], 48
    %v692 = vld [vmem:[%s691] sm:$0xff]
    %v693 = vpack.c.bf16 %v689, %v689
    %694 = vmatprep.subr.bf16.mxu0 0
    %695 = vmatpush1.bf16.msra.mxu0 %v300
    %696 = vmatprep.subr.bf16.mxu0 0
    %697 = vmatpush1.bf16.msra.mxu0 %v301
    %698 = vmatprep.subr.bf16.mxu0 0
    %699 = vmatpush1.bf16.msra.mxu0 %v302
    %700 = vmatprep.subr.bf16.mxu0 0
    %701 = vmatpush1.bf16.msra.mxu0 %v303
    %702 = vmatprep.subr.bf16.mxu0 0
    %703 = vmatpush1.bf16.msra.mxu0 %v304
    %704 = vmatprep.subr.bf16.mxu0 0
    %705 = vmatpush1.bf16.msra.mxu0 %v305
    %706 = vmatprep.subr.bf16.mxu0 0
    %707 = vmatpush1.bf16.msra.mxu0 %v306
    %708 = vmatprep.subr.bf16.mxu0 0
    %709 = vmatpush1.bf16.msra.mxu0 %v307
    %710 = vmatprep.subr.bf16.mxu0 0
    %711 = vmatpush1.bf16.msra.mxu0 0
    %712 = vmatprep.subr.bf16.mxu0 0
    %713 = vmatpush1.bf16.msra.mxu0 0
    %714 = vmatprep.subr.bf16.mxu0 0
    %715 = vmatpush1.bf16.msra.mxu0 0
    %716 = vmatprep.subr.bf16.mxu0 0
    %717 = vmatpush1.bf16.msra.mxu0 0
    %718 = vmatprep.subr.bf16.mxu0 0
    %719 = vmatpush1.bf16.msra.mxu0 0
    %720 = vmatprep.subr.bf16.mxu0 0
    %721 = vmatpush1.bf16.msra.mxu0 0
    %722 = vmatprep.subr.bf16.mxu0 0
    %723 = vmatpush1.bf16.msra.mxu0 0
    %724 = vmatprep.subr.bf16.mxu0 0
    %725 = vmatpush1.bf16.msra.mxu0 0
    %726 = vmatprep.mubr.bf16.mxu0 0
    %727 = vmatmul.mubr.bf16.gmra.mrb[0].mxu0 %v693
    %v728 = vpop.f32.mrb[0].mxu0
    %v729 = vadd.f32 0.0, %v728
    %v730 = vpop.f32.mrb[0].mxu0
    %v731 = vpop.f32.mrb[0].mxu0
    %v732 = vpop.f32.mrb[0].mxu0
    %733 = vdwg.mxu0
    %v734 = vadd.f32 %v692, %v729
    %v735 = vmul.f32 %v734, 0.5
    %v736 = vsel %vm91, %v734, %v735
    %v737 = vtanh.pop %v736
    %v738 = vmul.f32 %v737, 0.5
    %v739 = vadd.f32 %v738, 0.5
    %v740 = vsel %vm91, %v737, %v739
    %741 = vrot.lane.b32.xlu0 %v740, 64
    %v742 = vpop.permute.xlu0 %741
    %743 = vrot.lane.b32.xlu0 %v740, 32
    %v744 = vpop.permute.xlu0 %743
    %745 = vrot.lane.b32.xlu0 %v740, 96
    %v746 = vpop.permute.xlu0 %745
    %v747 = vmul.f32 %v744, %v687
    %v748 = vmul.f32 %v742, %v740
    %v749 = vadd.f32 %v747, %v748
    %v750 = vsel %vm91, %v749, 0.0
    %v751 = vtanh.pop %v750
    %v752 = vmul.f32 %v746, %v751
    %753 = vst [vmem:[%s691] sm:$0xff] %v752
    %s754 = scalar_lea.vmem [#allocation2], 56
    %v755 = vld [vmem:[%s754] sm:$0xff]
    %v756 = vpack.c.bf16 %v752, %v752
    %757 = vmatprep.subr.bf16.mxu0 0
    %758 = vmatpush1.bf16.msra.mxu0 %v300
    %759 = vmatprep.subr.bf16.mxu0 0
    %760 = vmatpush1.bf16.msra.mxu0 %v301
    %761 = vmatprep.subr.bf16.mxu0 0
    %762 = vmatpush1.bf16.msra.mxu0 %v302
    %763 = vmatprep.subr.bf16.mxu0 0
    %764 = vmatpush1.bf16.msra.mxu0 %v303
    %765 = vmatprep.subr.bf16.mxu0 0
    %766 = vmatpush1.bf16.msra.mxu0 %v304
    %767 = vmatprep.subr.bf16.mxu0 0
    %768 = vmatpush1.bf16.msra.mxu0 %v305
    %769 = vmatprep.subr.bf16.mxu0 0
    %770 = vmatpush1.bf16.msra.mxu0 %v306
    %771 = vmatprep.subr.bf16.mxu0 0
    %772 = vmatpush1.bf16.msra.mxu0 %v307
    %773 = vmatprep.subr.bf16.mxu0 0
    %774 = vmatpush1.bf16.msra.mxu0 0
    %775 = vmatprep.subr.bf16.mxu0 0
    %776 = vmatpush1.bf16.msra.mxu0 0
    %777 = vmatprep.subr.bf16.mxu0 0
    %778 = vmatpush1.bf16.msra.mxu0 0
    %779 = vmatprep.subr.bf16.mxu0 0
    %780 = vmatpush1.bf16.msra.mxu0 0
    %781 = vmatprep.subr.bf16.mxu0 0
    %782 = vmatpush1.bf16.msra.mxu0 0
    %783 = vmatprep.subr.bf16.mxu0 0
    %784 = vmatpush1.bf16.msra.mxu0 0
    %785 = vmatprep.subr.bf16.mxu0 0
    %786 = vmatpush1.bf16.msra.mxu0 0
    %787 = vmatprep.subr.bf16.mxu0 0
    %788 = vmatpush1.bf16.msra.mxu0 0
    %789 = vmatprep.mubr.bf16.mxu0 0
    %790 = vmatmul.mubr.bf16.gmra.mrb[0].mxu0 %v756
    %v791 = vpop.f32.mrb[0].mxu0
    %v792 = vadd.f32 0.0, %v791
    %v793 = vpop.f32.mrb[0].mxu0
    %v794 = vpop.f32.mrb[0].mxu0
    %v795 = vpop.f32.mrb[0].mxu0
    %796 = vdwg.mxu0
    %v797 = vadd.f32 %v755, %v792
    %v798 = vmul.f32 %v797, 0.5
    %v799 = vsel %vm91, %v797, %v798
    %v800 = vtanh.pop %v799
    %v801 = vmul.f32 %v800, 0.5
    %v802 = vadd.f32 %v801, 0.5
    %v803 = vsel %vm91, %v800, %v802
    %804 = vrot.lane.b32.xlu0 %v803, 64
    %v805 = vpop.permute.xlu0 %804
    %806 = vrot.lane.b32.xlu0 %v803, 32
    %v807 = vpop.permute.xlu0 %806
    %808 = vrot.lane.b32.xlu0 %v803, 96
    %v809 = vpop.permute.xlu0 %808
    %v810 = vmul.f32 %v807, %v750
    %v811 = vmul.f32 %v805, %v803
    %v812 = vadd.f32 %v810, %v811
    %v813 = vsel %vm91, %v812, 0.0
    %v814 = vtanh.pop %v813
    %v815 = vmul.f32 %v809, %v814
    %816 = vst [vmem:[%s754] sm:$0xff] %v815
    %v817 = vld [vmem:[#allocation2] sm:$0xff]
    %v818 = vld [vmem:[#allocation2 + $0x8] sm:$0xff]
    %v819 = vld [vmem:[#allocation2 + $0x10] sm:$0xff]
    %v820 = vld [vmem:[#allocation2 + $0x18] sm:$0xff]
    %v821 = vld [vmem:[#allocation2 + $0x20] sm:$0xff]
    %v822 = vld [vmem:[#allocation2 + $0x28] sm:$0xff]
    %v823 = vld [vmem:[#allocation2 + $0x30] sm:$0xff]
    %v824 = vld [vmem:[#allocation2 + $0x38] sm:$0xff]
    %v825 = vpack.c.bf16 %v818, %v817
    %v826 = vpack.c.bf16 %v820, %v819
    %v827 = vpack.c.bf16 %v822, %v821
    %v828 = vpack.c.bf16 %v824, %v823
    %s829 = scalar_lea.vmem [#allocation8], 64
    %v830 = vld [vmem:[%s829] sm:$0xf]
    %v831 = vld [vmem:[%s829 + $0x4] sm:$0xf]
    %v832 = vld [vmem:[%s829 + $0x8] sm:$0xf]
    %v833 = vld [vmem:[%s829 + $0xc] sm:$0xf]
    %v834 = vld [vmem:[%s829 + $0x10] sm:$0xf]
    %v835 = vld [vmem:[%s829 + $0x14] sm:$0xf]
    %v836 = vld [vmem:[%s829 + $0x18] sm:$0xf]
    %v837 = vld [vmem:[%s829 + $0x1c] sm:$0xf]
    %v838 = vld [vmem:[%s829 + $0x20] sm:$0xf]
    %v839 = vld [vmem:[%s829 + $0x24] sm:$0xf]
    %v840 = vld [vmem:[%s829 + $0x28] sm:$0xf]
    %v841 = vld [vmem:[%s829 + $0x2c] sm:$0xf]
    %v842 = vld [vmem:[%s829 + $0x30] sm:$0xf]
    %v843 = vld [vmem:[%s829 + $0x34] sm:$0xf]
    %v844 = vld [vmem:[%s829 + $0x38] sm:$0xf]
    %v845 = vld [vmem:[%s829 + $0x3c] sm:$0xf]
    %s846 = scalar_lea.vmem %s3, 1
    %v847 = vld [vmem:[%s846] sm:$0x1]
    %v849 = vlaneseq
    %v850 = vshrl.u32 %v849, 7
    %v851 = vsub.s32 0, %v850
    %v852 = vrot.slane %v847, %v851
    %v870 = vunpack.c.l.b16 %v830
    %v871 = vunpack.c.l.b16 %v831
    %v872 = vunpack.c.l.b16 %v832
    %v873 = vunpack.c.l.b16 %v833
    %v874 = vunpack.c.l.b16 %v834
    %v875 = vunpack.c.l.b16 %v835
    %v876 = vunpack.c.l.b16 %v836
    %v877 = vunpack.c.l.b16 %v837
    %v878 = vunpack.c.l.b16 %v838
    %v879 = vunpack.c.l.b16 %v839
    %v880 = vunpack.c.l.b16 %v840
    %v881 = vunpack.c.l.b16 %v841
    %v882 = vunpack.c.l.b16 %v842
    %v883 = vunpack.c.l.b16 %v843
    %v884 = vunpack.c.l.b16 %v844
    %v885 = vunpack.c.l.b16 %v845
    %v886 = vpack.c.b16 %v871, %v870
    %v887 = vpack.c.b16 %v873, %v872
    %v888 = vpack.c.b16 %v875, %v874
    %v889 = vpack.c.b16 %v877, %v876
    %v890 = vpack.c.b16 %v879, %v878
    %v891 = vpack.c.b16 %v881, %v880
    %v892 = vpack.c.b16 %v883, %v882
    %v893 = vpack.c.b16 %v885, %v884
    %902 = vmatprep.subr.bf16.mxu0 0
    %903 = vmatpush1.bf16.msra.mxu0 %v886
    %904 = vmatprep.subr.bf16.mxu0 0
    %905 = vmatpush1.bf16.msra.mxu0 %v887
    %906 = vmatprep.subr.bf16.mxu0 0
    %907 = vmatpush1.bf16.msra.mxu0 %v888
    %908 = vmatprep.subr.bf16.mxu0 0
    %909 = vmatpush1.bf16.msra.mxu0 %v889
    %910 = vmatprep.subr.bf16.mxu0 0
    %911 = vmatpush1.bf16.msra.mxu0 %v890
    %912 = vmatprep.subr.bf16.mxu0 0
    %913 = vmatpush1.bf16.msra.mxu0 %v891
    %914 = vmatprep.subr.bf16.mxu0 0
    %915 = vmatpush1.bf16.msra.mxu0 %v892
    %916 = vmatprep.subr.bf16.mxu0 0
    %917 = vmatpush1.bf16.msra.mxu0 %v893
    %918 = vmatprep.subr.bf16.mxu0 0
    %919 = vmatpush1.bf16.msra.mxu0 0
    %920 = vmatprep.subr.bf16.mxu0 0
    %921 = vmatpush1.bf16.msra.mxu0 0
    %922 = vmatprep.subr.bf16.mxu0 0
    %923 = vmatpush1.bf16.msra.mxu0 0
    %924 = vmatprep.subr.bf16.mxu0 0
    %925 = vmatpush1.bf16.msra.mxu0 0
    %926 = vmatprep.subr.bf16.mxu0 0
    %927 = vmatpush1.bf16.msra.mxu0 0
    %928 = vmatprep.subr.bf16.mxu0 0
    %929 = vmatpush1.bf16.msra.mxu0 0
    %930 = vmatprep.subr.bf16.mxu0 0
    %931 = vmatpush1.bf16.msra.mxu0 0
    %932 = vmatprep.subr.bf16.mxu0 0
    %933 = vmatpush1.bf16.msra.mxu0 0
    %934 = vmatprep.mubr.bf16.mxu0 0
    %935 = vmatmul.mubr.bf16.gmra.mrb[0].mxu0 %v825
    %v936 = vpop.f32.mrb[0].mxu0
    %v937 = vadd.f32 %v852, %v936
    %v938 = vpop.f32.mrb[0].mxu0
    %v939 = vpop.f32.mrb[0].mxu0
    %v940 = vadd.f32 %v852, %v939
    %v941 = vpop.f32.mrb[0].mxu0
    %942 = vmatprep.mubr.bf16.mxu0 0
    %943 = vmatmul.mubr.bf16.gmra.mrb[0].mxu0 %v826
    %v944 = vpop.f32.mrb[0].mxu0
    %v945 = vadd.f32 %v852, %v944
    %v946 = vpop.f32.mrb[0].mxu0
    %v947 = vpop.f32.mrb[0].mxu0
    %v948 = vadd.f32 %v852, %v947
    %v949 = vpop.f32.mrb[0].mxu0
    %950 = vmatprep.mubr.bf16.mxu0 0
    %951 = vmatmul.mubr.bf16.gmra.mrb[0].mxu0 %v827
    %v952 = vpop.f32.mrb[0].mxu0
    %v953 = vadd.f32 %v852, %v952
    %v954 = vpop.f32.mrb[0].mxu0
    %v955 = vpop.f32.mrb[0].mxu0
    %v956 = vadd.f32 %v852, %v955
    %v957 = vpop.f32.mrb[0].mxu0
    %958 = vmatprep.mubr.bf16.mxu0 0
    %959 = vmatmul.mubr.bf16.gmra.mrb[0].mxu0 %v828
    %v960 = vpop.f32.mrb[0].mxu0
    %v961 = vadd.f32 %v852, %v960
    %v962 = vpop.f32.mrb[0].mxu0
    %v963 = vpop.f32.mrb[0].mxu0
    %v964 = vadd.f32 %v852, %v963
    %v965 = vpop.f32.mrb[0].mxu0
    %966 = vdwg.mxu0
    %967 = vst [vmem:[#allocation3] sm:$0xff] %v937
    %968 = vst [vmem:[#allocation3 + $0x8] sm:$0xff] %v940
    %969 = vst [vmem:[#allocation3 + $0x10] sm:$0xff] %v945
    %970 = vst [vmem:[#allocation3 + $0x18] sm:$0xff] %v948
    %971 = vst [vmem:[#allocation3 + $0x20] sm:$0xff] %v953
    %972 = vst [vmem:[#allocation3 + $0x28] sm:$0xff] %v956
    %973 = vst [vmem:[#allocation3 + $0x30] sm:$0xff] %v961
    %974 = vst [vmem:[#allocation3 + $0x38] sm:$0xff] %v964
    %s975 = scalar_lea.vmem [#allocation10], 64
    %v976 = vld [vmem:[%s975] sm:$0xf]
    %v977 = vld [vmem:[%s975 + $0x4] sm:$0xf]
    %v978 = vld [vmem:[%s975 + $0x8] sm:$0xf]
    %v979 = vld [vmem:[%s975 + $0xc] sm:$0xf]
    %v980 = vld [vmem:[%s975 + $0x10] sm:$0xf]
    %v981 = vld [vmem:[%s975 + $0x14] sm:$0xf]
    %v982 = vld [vmem:[%s975 + $0x18] sm:$0xf]
    %v983 = vld [vmem:[%s975 + $0x1c] sm:$0xf]
    %v984 = vld [vmem:[%s975 + $0x20] sm:$0xf]
    %v985 = vld [vmem:[%s975 + $0x24] sm:$0xf]
    %v986 = vld [vmem:[%s975 + $0x28] sm:$0xf]
    %v987 = vld [vmem:[%s975 + $0x2c] sm:$0xf]
    %v988 = vld [vmem:[%s975 + $0x30] sm:$0xf]
    %v989 = vld [vmem:[%s975 + $0x34] sm:$0xf]
    %v990 = vld [vmem:[%s975 + $0x38] sm:$0xf]
    %v991 = vld [vmem:[%s975 + $0x3c] sm:$0xf]
    %s992 = scalar_lea.vmem %s4, 8
    %v993 = vld [vmem:[%s992] sm:$0xff]
    %s994 = scalar_lea.vmem [#allocation11], 8
    %v995 = vld [vmem:[%s994] sm:$0xff]
    %v996 = vld [vmem:[#allocation3] sm:$0xff]
    %v997 = vpack.c.bf16 %v993, %v993
    %v1014 = vunpack.c.l.b16 %v976
    %v1015 = vunpack.c.l.b16 %v977
    %v1016 = vunpack.c.l.b16 %v978
    %v1017 = vunpack.c.l.b16 %v979
    %v1018 = vunpack.c.l.b16 %v980
    %v1019 = vunpack.c.l.b16 %v981
    %v1020 = vunpack.c.l.b16 %v982
    %v1021 = vunpack.c.l.b16 %v983
    %v1022 = vunpack.c.l.b16 %v984
    %v1023 = vunpack.c.l.b16 %v985
    %v1024 = vunpack.c.l.b16 %v986
    %v1025 = vunpack.c.l.b16 %v987
    %v1026 = vunpack.c.l.b16 %v988
    %v1027 = vunpack.c.l.b16 %v989
    %v1028 = vunpack.c.l.b16 %v990
    %v1029 = vunpack.c.l.b16 %v991
    %v1030 = vpack.c.b16 %v1015, %v1014
    %v1031 = vpack.c.b16 %v1017, %v1016
    %v1032 = vpack.c.b16 %v1019, %v1018
    %v1033 = vpack.c.b16 %v1021, %v1020
    %v1034 = vpack.c.b16 %v1023, %v1022
    %v1035 = vpack.c.b16 %v1025, %v1024
    %v1036 = vpack.c.b16 %v1027, %v1026
    %v1037 = vpack.c.b16 %v1029, %v1028
    %1046 = vmatprep.subr.bf16.mxu0 0
    %1047 = vmatpush1.bf16.msra.mxu0 %v1030
    %1048 = vmatprep.subr.bf16.mxu0 0
    %1049 = vmatpush1.bf16.msra.mxu0 %v1031
    %1050 = vmatprep.subr.bf16.mxu0 0
    %1051 = vmatpush1.bf16.msra.mxu0 %v1032
    %1052 = vmatprep.subr.bf16.mxu0 0
    %1053 = vmatpush1.bf16.msra.mxu0 %v1033
    %1054 = vmatprep.subr.bf16.mxu0 0
    %1055 = vmatpush1.bf16.msra.mxu0 %v1034
    %1056 = vmatprep.subr.bf16.mxu0 0
    %1057 = vmatpush1.bf16.msra.mxu0 %v1035
    %1058 = vmatprep.subr.bf16.mxu0 0
    %1059 = vmatpush1.bf16.msra.mxu0 %v1036
    %1060 = vmatprep.subr.bf16.mxu0 0
    %1061 = vmatpush1.bf16.msra.mxu0 %v1037
    %1062 = vmatprep.subr.bf16.mxu0 0
    %1063 = vmatpush1.bf16.msra.mxu0 0
    %1064 = vmatprep.subr.bf16.mxu0 0
    %1065 = vmatpush1.bf16.msra.mxu0 0
    %1066 = vmatprep.subr.bf16.mxu0 0
    %1067 = vmatpush1.bf16.msra.mxu0 0
    %1068 = vmatprep.subr.bf16.mxu0 0
    %1069 = vmatpush1.bf16.msra.mxu0 0
    %1070 = vmatprep.subr.bf16.mxu0 0
    %1071 = vmatpush1.bf16.msra.mxu0 0
    %1072 = vmatprep.subr.bf16.mxu0 0
    %1073 = vmatpush1.bf16.msra.mxu0 0
    %1074 = vmatprep.subr.bf16.mxu0 0
    %1075 = vmatpush1.bf16.msra.mxu0 0
    %1076 = vmatprep.subr.bf16.mxu0 0
    %1077 = vmatpush1.bf16.msra.mxu0 0
    %1078 = vmatprep.mubr.bf16.mxu0 0
    %1079 = vmatmul.mubr.bf16.gmra.mrb[0].mxu0 %v997
    %v1080 = vpop.f32.mrb[0].mxu0
    %v1081 = vadd.f32 0.0, %v1080
    %v1082 = vpop.f32.mrb[0].mxu0
    %v1083 = vpop.f32.mrb[0].mxu0
    %v1084 = vpop.f32.mrb[0].mxu0
    %1085 = vdwg.mxu0
    %v1086 = vadd.f32 %v996, %v1081
    %v1087 = vmul.f32 %v1086, 0.5
    %v1088 = vsel %vm91, %v1086, %v1087
    %v1089 = vtanh.pop %v1088
    %v1090 = vmul.f32 %v1089, 0.5
    %v1091 = vadd.f32 %v1090, 0.5
    %v1092 = vsel %vm91, %v1089, %v1091
    %1093 = vrot.lane.b32.xlu0 %v1092, 64
    %v1094 = vpop.permute.xlu0 %1093
    %1095 = vrot.lane.b32.xlu0 %v1092, 32
    %v1096 = vpop.permute.xlu0 %1095
    %1097 = vrot.lane.b32.xlu0 %v1092, 96
    %v1098 = vpop.permute.xlu0 %1097
    %v1099 = vmul.f32 %v1096, %v995
    %v1100 = vmul.f32 %v1094, %v1092
    %v1101 = vadd.f32 %v1099, %v1100
    %v1102 = vsel %vm91, %v1101, 0.0
    %v1103 = vtanh.pop %v1102
    %v1104 = vmul.f32 %v1098, %v1103
    %1105 = vst [vmem:[#allocation3] sm:$0xff] %v1104
    %s1106 = scalar_lea.vmem [#allocation3], 8
    %v1107 = vld [vmem:[%s1106] sm:$0xff]
    %v1108 = vpack.c.bf16 %v1104, %v1104
    %1109 = vmatprep.subr.bf16.mxu0 0
    %1110 = vmatpush1.bf16.msra.mxu0 %v1030
    %1111 = vmatprep.subr.bf16.mxu0 0
    %1112 = vmatpush1.bf16.msra.mxu0 %v1031
    %1113 = vmatprep.subr.bf16.mxu0 0
    %1114 = vmatpush1.bf16.msra.mxu0 %v1032
    %1115 = vmatprep.subr.bf16.mxu0 0
    %1116 = vmatpush1.bf16.msra.mxu0 %v1033
    %1117 = vmatprep.subr.bf16.mxu0 0
    %1118 = vmatpush1.bf16.msra.mxu0 %v1034
    %1119 = vmatprep.subr.bf16.mxu0 0
    %1120 = vmatpush1.bf16.msra.mxu0 %v1035
    %1121 = vmatprep.subr.bf16.mxu0 0
    %1122 = vmatpush1.bf16.msra.mxu0 %v1036
    %1123 = vmatprep.subr.bf16.mxu0 0
    %1124 = vmatpush1.bf16.msra.mxu0 %v1037
    %1125 = vmatprep.subr.bf16.mxu0 0
    %1126 = vmatpush1.bf16.msra.mxu0 0
    %1127 = vmatprep.subr.bf16.mxu0 0
    %1128 = vmatpush1.bf16.msra.mxu0 0
    %1129 = vmatprep.subr.bf16.mxu0 0
    %1130 = vmatpush1.bf16.msra.mxu0 0
    %1131 = vmatprep.subr.bf16.mxu0 0
    %1132 = vmatpush1.bf16.msra.mxu0 0
    %1133 = vmatprep.subr.bf16.mxu0 0
    %1134 = vmatpush1.bf16.msra.mxu0 0
    %1135 = vmatprep.subr.bf16.mxu0 0
    %1136 = vmatpush1.bf16.msra.mxu0 0
    %1137 = vmatprep.subr.bf16.mxu0 0
    %1138 = vmatpush1.bf16.msra.mxu0 0
    %1139 = vmatprep.subr.bf16.mxu0 0
    %1140 = vmatpush1.bf16.msra.mxu0 0
    %1141 = vmatprep.mubr.bf16.mxu0 0
    %1142 = vmatmul.mubr.bf16.gmra.mrb[0].mxu0 %v1108
    %v1143 = vpop.f32.mrb[0].mxu0
    %v1144 = vadd.f32 0.0, %v1143
    %v1145 = vpop.f32.mrb[0].mxu0
    %v1146 = vpop.f32.mrb[0].mxu0
    %v1147 = vpop.f32.mrb[0].mxu0
    %1148 = vdwg.mxu0
    %v1149 = vadd.f32 %v1107, %v1144
    %v1150 = vmul.f32 %v1149, 0.5
    %v1151 = vsel %vm91, %v1149, %v1150
    %v1152 = vtanh.pop %v1151
    %v1153 = vmul.f32 %v1152, 0.5
    %v1154 = vadd.f32 %v1153, 0.5
    %v1155 = vsel %vm91, %v1152, %v1154
    %1156 = vrot.lane.b32.xlu0 %v1155, 64
    %v1157 = vpop.permute.xlu0 %1156
    %1158 = vrot.lane.b32.xlu0 %v1155, 32
    %v1159 = vpop.permute.xlu0 %1158
    %1160 = vrot.lane.b32.xlu0 %v1155, 96
    %v1161 = vpop.permute.xlu0 %1160
    %v1162 = vmul.f32 %v1159, %v1102
    %v1163 = vmul.f32 %v1157, %v1155
    %v1164 = vadd.f32 %v1162, %v1163
    %v1165 = vsel %vm91, %v1164, 0.0
    %v1166 = vtanh.pop %v1165
    %v1167 = vmul.f32 %v1161, %v1166
    %1168 = vst [vmem:[%s1106] sm:$0xff] %v1167
    %s1169 = scalar_lea.vmem [#allocation3], 16
    %v1170 = vld [vmem:[%s1169] sm:$0xff]
    %v1171 = vpack.c.bf16 %v1167, %v1167
    %1172 = vmatprep.subr.bf16.mxu0 0
    %1173 = vmatpush1.bf16.msra.mxu0 %v1030
    %1174 = vmatprep.subr.bf16.mxu0 0
    %1175 = vmatpush1.bf16.msra.mxu0 %v1031
    %1176 = vmatprep.subr.bf16.mxu0 0
    %1177 = vmatpush1.bf16.msra.mxu0 %v1032
    %1178 = vmatprep.subr.bf16.mxu0 0
    %1179 = vmatpush1.bf16.msra.mxu0 %v1033
    %1180 = vmatprep.subr.bf16.mxu0 0
    %1181 = vmatpush1.bf16.msra.mxu0 %v1034
    %1182 = vmatprep.subr.bf16.mxu0 0
    %1183 = vmatpush1.bf16.msra.mxu0 %v1035
    %1184 = vmatprep.subr.bf16.mxu0 0
    %1185 = vmatpush1.bf16.msra.mxu0 %v1036
    %1186 = vmatprep.subr.bf16.mxu0 0
    %1187 = vmatpush1.bf16.msra.mxu0 %v1037
    %1188 = vmatprep.subr.bf16.mxu0 0
    %1189 = vmatpush1.bf16.msra.mxu0 0
    %1190 = vmatprep.subr.bf16.mxu0 0
    %1191 = vmatpush1.bf16.msra.mxu0 0
    %1192 = vmatprep.subr.bf16.mxu0 0
    %1193 = vmatpush1.bf16.msra.mxu0 0
    %1194 = vmatprep.subr.bf16.mxu0 0
    %1195 = vmatpush1.bf16.msra.mxu0 0
    %1196 = vmatprep.subr.bf16.mxu0 0
    %1197 = vmatpush1.bf16.msra.mxu0 0
    %1198 = vmatprep.subr.bf16.mxu0 0
    %1199 = vmatpush1.bf16.msra.mxu0 0
    %1200 = vmatprep.subr.bf16.mxu0 0
    %1201 = vmatpush1.bf16.msra.mxu0 0
    %1202 = vmatprep.subr.bf16.mxu0 0
    %1203 = vmatpush1.bf16.msra.mxu0 0
    %1204 = vmatprep.mubr.bf16.mxu0 0
    %1205 = vmatmul.mubr.bf16.gmra.mrb[0].mxu0 %v1171
    %v1206 = vpop.f32.mrb[0].mxu0
    %v1207 = vadd.f32 0.0, %v1206
    %v1208 = vpop.f32.mrb[0].mxu0
    %v1209 = vpop.f32.mrb[0].mxu0
    %v1210 = vpop.f32.mrb[0].mxu0
    %1211 = vdwg.mxu0
    %v1212 = vadd.f32 %v1170, %v1207
    %v1213 = vmul.f32 %v1212, 0.5
    %v1214 = vsel %vm91, %v1212, %v1213
    %v1215 = vtanh.pop %v1214
    %v1216 = vmul.f32 %v1215, 0.5
    %v1217 = vadd.f32 %v1216, 0.5
    %v1218 = vsel %vm91, %v1215, %v1217
    %1219 = vrot.lane.b32.xlu0 %v1218, 64
    %v1220 = vpop.permute.xlu0 %1219
    %1221 = vrot.lane.b32.xlu0 %v1218, 32
    %v1222 = vpop.permute.xlu0 %1221
    %1223 = vrot.lane.b32.xlu0 %v1218, 96
    %v1224 = vpop.permute.xlu0 %1223
    %v1225 = vmul.f32 %v1222, %v1165
    %v1226 = vmul.f32 %v1220, %v1218
    %v1227 = vadd.f32 %v1225, %v1226
    %v1228 = vsel %vm91, %v1227, 0.0
    %v1229 = vtanh.pop %v1228
    %v1230 = vmul.f32 %v1224, %v1229
    %1231 = vst [vmem:[%s1169] sm:$0xff] %v1230
    %s1232 = scalar_lea.vmem [#allocation3], 24
    %v1233 = vld [vmem:[%s1232] sm:$0xff]
    %v1234 = vpack.c.bf16 %v1230, %v1230
    %1235 = vmatprep.subr.bf16.mxu0 0
    %1236 = vmatpush1.bf16.msra.mxu0 %v1030
    %1237 = vmatprep.subr.bf16.mxu0 0
    %1238 = vmatpush1.bf16.msra.mxu0 %v1031
    %1239 = vmatprep.subr.bf16.mxu0 0
    %1240 = vmatpush1.bf16.msra.mxu0 %v1032
    %1241 = vmatprep.subr.bf16.mxu0 0
    %1242 = vmatpush1.bf16.msra.mxu0 %v1033
    %1243 = vmatprep.subr.bf16.mxu0 0
    %1244 = vmatpush1.bf16.msra.mxu0 %v1034
    %1245 = vmatprep.subr.bf16.mxu0 0
    %1246 = vmatpush1.bf16.msra.mxu0 %v1035
    %1247 = vmatprep.subr.bf16.mxu0 0
    %1248 = vmatpush1.bf16.msra.mxu0 %v1036
    %1249 = vmatprep.subr.bf16.mxu0 0
    %1250 = vmatpush1.bf16.msra.mxu0 %v1037
    %1251 = vmatprep.subr.bf16.mxu0 0
    %1252 = vmatpush1.bf16.msra.mxu0 0
    %1253 = vmatprep.subr.bf16.mxu0 0
    %1254 = vmatpush1.bf16.msra.mxu0 0
    %1255 = vmatprep.subr.bf16.mxu0 0
    %1256 = vmatpush1.bf16.msra.mxu0 0
    %1257 = vmatprep.subr.bf16.mxu0 0
    %1258 = vmatpush1.bf16.msra.mxu0 0
    %1259 = vmatprep.subr.bf16.mxu0 0
    %1260 = vmatpush1.bf16.msra.mxu0 0
    %1261 = vmatprep.subr.bf16.mxu0 0
    %1262 = vmatpush1.bf16.msra.mxu0 0
    %1263 = vmatprep.subr.bf16.mxu0 0
    %1264 = vmatpush1.bf16.msra.mxu0 0
    %1265 = vmatprep.subr.bf16.mxu0 0
    %1266 = vmatpush1.bf16.msra.mxu0 0
    %1267 = vmatprep.mubr.bf16.mxu0 0
    %1268 = vmatmul.mubr.bf16.gmra.mrb[0].mxu0 %v1234
    %v1269 = vpop.f32.mrb[0].mxu0
    %v1270 = vadd.f32 0.0, %v1269
    %v1271 = vpop.f32.mrb[0].mxu0
    %v1272 = vpop.f32.mrb[0].mxu0
    %v1273 = vpop.f32.mrb[0].mxu0
    %1274 = vdwg.mxu0
    %v1275 = vadd.f32 %v1233, %v1270
    %v1276 = vmul.f32 %v1275, 0.5
    %v1277 = vsel %vm91, %v1275, %v1276
    %v1278 = vtanh.pop %v1277
    %v1279 = vmul.f32 %v1278, 0.5
    %v1280 = vadd.f32 %v1279, 0.5
    %v1281 = vsel %vm91, %v1278, %v1280
    %1282 = vrot.lane.b32.xlu0 %v1281, 64
    %v1283 = vpop.permute.xlu0 %1282
    %1284 = vrot.lane.b32.xlu0 %v1281, 32
    %v1285 = vpop.permute.xlu0 %1284
    %1286 = vrot.lane.b32.xlu0 %v1281, 96
    %v1287 = vpop.permute.xlu0 %1286
    %v1288 = vmul.f32 %v1285, %v1228
    %v1289 = vmul.f32 %v1283, %v1281
    %v1290 = vadd.f32 %v1288, %v1289
    %v1291 = vsel %vm91, %v1290, 0.0
    %v1292 = vtanh.pop %v1291
    %v1293 = vmul.f32 %v1287, %v1292
    %1294 = vst [vmem:[%s1232] sm:$0xff] %v1293
    %s1295 = scalar_lea.vmem [#allocation3], 32
    %v1296 = vld [vmem:[%s1295] sm:$0xff]
    %v1297 = vpack.c.bf16 %v1293, %v1293
    %1298 = vmatprep.subr.bf16.mxu0 0
    %1299 = vmatpush1.bf16.msra.mxu0 %v1030
    %1300 = vmatprep.subr.bf16.mxu0 0
    %1301 = vmatpush1.bf16.msra.mxu0 %v1031
    %1302 = vmatprep.subr.bf16.mxu0 0
    %1303 = vmatpush1.bf16.msra.mxu0 %v1032
    %1304 = vmatprep.subr.bf16.mxu0 0
    %1305 = vmatpush1.bf16.msra.mxu0 %v1033
    %1306 = vmatprep.subr.bf16.mxu0 0
    %1307 = vmatpush1.bf16.msra.mxu0 %v1034
    %1308 = vmatprep.subr.bf16.mxu0 0
    %1309 = vmatpush1.bf16.msra.mxu0 %v1035
    %1310 = vmatprep.subr.bf16.mxu0 0
    %1311 = vmatpush1.bf16.msra.mxu0 %v1036
    %1312 = vmatprep.subr.bf16.mxu0 0
    %1313 = vmatpush1.bf16.msra.mxu0 %v1037
    %1314 = vmatprep.subr.bf16.mxu0 0
    %1315 = vmatpush1.bf16.msra.mxu0 0
    %1316 = vmatprep.subr.bf16.mxu0 0
    %1317 = vmatpush1.bf16.msra.mxu0 0
    %1318 = vmatprep.subr.bf16.mxu0 0
    %1319 = vmatpush1.bf16.msra.mxu0 0
    %1320 = vmatprep.subr.bf16.mxu0 0
    %1321 = vmatpush1.bf16.msra.mxu0 0
    %1322 = vmatprep.subr.bf16.mxu0 0
    %1323 = vmatpush1.bf16.msra.mxu0 0
    %1324 = vmatprep.subr.bf16.mxu0 0
    %1325 = vmatpush1.bf16.msra.mxu0 0
    %1326 = vmatprep.subr.bf16.mxu0 0
    %1327 = vmatpush1.bf16.msra.mxu0 0
    %1328 = vmatprep.subr.bf16.mxu0 0
    %1329 = vmatpush1.bf16.msra.mxu0 0
    %1330 = vmatprep.mubr.bf16.mxu0 0
    %1331 = vmatmul.mubr.bf16.gmra.mrb[0].mxu0 %v1297
    %v1332 = vpop.f32.mrb[0].mxu0
    %v1333 = vadd.f32 0.0, %v1332
    %v1334 = vpop.f32.mrb[0].mxu0
    %v1335 = vpop.f32.mrb[0].mxu0
    %v1336 = vpop.f32.mrb[0].mxu0
    %1337 = vdwg.mxu0
    %v1338 = vadd.f32 %v1296, %v1333
    %v1339 = vmul.f32 %v1338, 0.5
    %v1340 = vsel %vm91, %v1338, %v1339
    %v1341 = vtanh.pop %v1340
    %v1342 = vmul.f32 %v1341, 0.5
    %v1343 = vadd.f32 %v1342, 0.5
    %v1344 = vsel %vm91, %v1341, %v1343
    %1345 = vrot.lane.b32.xlu0 %v1344, 64
    %v1346 = vpop.permute.xlu0 %1345
    %1347 = vrot.lane.b32.xlu0 %v1344, 32
    %v1348 = vpop.permute.xlu0 %1347
    %1349 = vrot.lane.b32.xlu0 %v1344, 96
    %v1350 = vpop.permute.xlu0 %1349
    %v1351 = vmul.f32 %v1348, %v1291
    %v1352 = vmul.f32 %v1346, %v1344
    %v1353 = vadd.f32 %v1351, %v1352
    %v1354 = vsel %vm91, %v1353, 0.0
    %v1355 = vtanh.pop %v1354
    %v1356 = vmul.f32 %v1350, %v1355
    %1357 = vst [vmem:[%s1295] sm:$0xff] %v1356
    %s1358 = scalar_lea.vmem [#allocation3], 40
    %v1359 = vld [vmem:[%s1358] sm:$0xff]
    %v1360 = vpack.c.bf16 %v1356, %v1356
    %1361 = vmatprep.subr.bf16.mxu0 0
    %1362 = vmatpush1.bf16.msra.mxu0 %v1030
    %1363 = vmatprep.subr.bf16.mxu0 0
    %1364 = vmatpush1.bf16.msra.mxu0 %v1031
    %1365 = vmatprep.subr.bf16.mxu0 0
    %1366 = vmatpush1.bf16.msra.mxu0 %v1032
    %1367 = vmatprep.subr.bf16.mxu0 0
    %1368 = vmatpush1.bf16.msra.mxu0 %v1033
    %1369 = vmatprep.subr.bf16.mxu0 0
    %1370 = vmatpush1.bf16.msra.mxu0 %v1034
    %1371 = vmatprep.subr.bf16.mxu0 0
    %1372 = vmatpush1.bf16.msra.mxu0 %v1035
    %1373 = vmatprep.subr.bf16.mxu0 0
    %1374 = vmatpush1.bf16.msra.mxu0 %v1036
    %1375 = vmatprep.subr.bf16.mxu0 0
    %1376 = vmatpush1.bf16.msra.mxu0 %v1037
    %1377 = vmatprep.subr.bf16.mxu0 0
    %1378 = vmatpush1.bf16.msra.mxu0 0
    %1379 = vmatprep.subr.bf16.mxu0 0
    %1380 = vmatpush1.bf16.msra.mxu0 0
    %1381 = vmatprep.subr.bf16.mxu0 0
    %1382 = vmatpush1.bf16.msra.mxu0 0
    %1383 = vmatprep.subr.bf16.mxu0 0
    %1384 = vmatpush1.bf16.msra.mxu0 0
    %1385 = vmatprep.subr.bf16.mxu0 0
    %1386 = vmatpush1.bf16.msra.mxu0 0
    %1387 = vmatprep.subr.bf16.mxu0 0
    %1388 = vmatpush1.bf16.msra.mxu0 0
    %1389 = vmatprep.subr.bf16.mxu0 0
    %1390 = vmatpush1.bf16.msra.mxu0 0
    %1391 = vmatprep.subr.bf16.mxu0 0
    %1392 = vmatpush1.bf16.msra.mxu0 0
    %1393 = vmatprep.mubr.bf16.mxu0 0
    %1394 = vmatmul.mubr.bf16.gmra.mrb[0].mxu0 %v1360
    %v1395 = vpop.f32.mrb[0].mxu0
    %v1396 = vadd.f32 0.0, %v1395
    %v1397 = vpop.f32.mrb[0].mxu0
    %v1398 = vpop.f32.mrb[0].mxu0
    %v1399 = vpop.f32.mrb[0].mxu0
    %1400 = vdwg.mxu0
    %v1401 = vadd.f32 %v1359, %v1396
    %v1402 = vmul.f32 %v1401, 0.5
    %v1403 = vsel %vm91, %v1401, %v1402
    %v1404 = vtanh.pop %v1403
    %v1405 = vmul.f32 %v1404, 0.5
    %v1406 = vadd.f32 %v1405, 0.5
    %v1407 = vsel %vm91, %v1404, %v1406
    %1408 = vrot.lane.b32.xlu0 %v1407, 64
    %v1409 = vpop.permute.xlu0 %1408
    %1410 = vrot.lane.b32.xlu0 %v1407, 32
    %v1411 = vpop.permute.xlu0 %1410
    %1412 = vrot.lane.b32.xlu0 %v1407, 96
    %v1413 = vpop.permute.xlu0 %1412
    %v1414 = vmul.f32 %v1411, %v1354
    %v1415 = vmul.f32 %v1409, %v1407
    %v1416 = vadd.f32 %v1414, %v1415
    %v1417 = vsel %vm91, %v1416, 0.0
    %v1418 = vtanh.pop %v1417
    %v1419 = vmul.f32 %v1413, %v1418
    %1420 = vst [vmem:[%s1358] sm:$0xff] %v1419
    %s1421 = scalar_lea.vmem [#allocation3], 48
    %v1422 = vld [vmem:[%s1421] sm:$0xff]
    %v1423 = vpack.c.bf16 %v1419, %v1419
    %1424 = vmatprep.subr.bf16.mxu0 0
    %1425 = vmatpush1.bf16.msra.mxu0 %v1030
    %1426 = vmatprep.subr.bf16.mxu0 0
    %1427 = vmatpush1.bf16.msra.mxu0 %v1031
    %1428 = vmatprep.subr.bf16.mxu0 0
    %1429 = vmatpush1.bf16.msra.mxu0 %v1032
    %1430 = vmatprep.subr.bf16.mxu0 0
    %1431 = vmatpush1.bf16.msra.mxu0 %v1033
    %1432 = vmatprep.subr.bf16.mxu0 0
    %1433 = vmatpush1.bf16.msra.mxu0 %v1034
    %1434 = vmatprep.subr.bf16.mxu0 0
    %1435 = vmatpush1.bf16.msra.mxu0 %v1035
    %1436 = vmatprep.subr.bf16.mxu0 0
    %1437 = vmatpush1.bf16.msra.mxu0 %v1036
    %1438 = vmatprep.subr.bf16.mxu0 0
    %1439 = vmatpush1.bf16.msra.mxu0 %v1037
    %1440 = vmatprep.subr.bf16.mxu0 0
    %1441 = vmatpush1.bf16.msra.mxu0 0
    %1442 = vmatprep.subr.bf16.mxu0 0
    %1443 = vmatpush1.bf16.msra.mxu0 0
    %1444 = vmatprep.subr.bf16.mxu0 0
    %1445 = vmatpush1.bf16.msra.mxu0 0
    %1446 = vmatprep.subr.bf16.mxu0 0
    %1447 = vmatpush1.bf16.msra.mxu0 0
    %1448 = vmatprep.subr.bf16.mxu0 0
    %1449 = vmatpush1.bf16.msra.mxu0 0
    %1450 = vmatprep.subr.bf16.mxu0 0
    %1451 = vmatpush1.bf16.msra.mxu0 0
    %1452 = vmatprep.subr.bf16.mxu0 0
    %1453 = vmatpush1.bf16.msra.mxu0 0
    %1454 = vmatprep.subr.bf16.mxu0 0
    %1455 = vmatpush1.bf16.msra.mxu0 0
    %1456 = vmatprep.mubr.bf16.mxu0 0
    %1457 = vmatmul.mubr.bf16.gmra.mrb[0].mxu0 %v1423
    %v1458 = vpop.f32.mrb[0].mxu0
    %v1459 = vadd.f32 0.0, %v1458
    %v1460 = vpop.f32.mrb[0].mxu0
    %v1461 = vpop.f32.mrb[0].mxu0
    %v1462 = vpop.f32.mrb[0].mxu0
    %1463 = vdwg.mxu0
    %v1464 = vadd.f32 %v1422, %v1459
    %v1465 = vmul.f32 %v1464, 0.5
    %v1466 = vsel %vm91, %v1464, %v1465
    %v1467 = vtanh.pop %v1466
    %v1468 = vmul.f32 %v1467, 0.5
    %v1469 = vadd.f32 %v1468, 0.5
    %v1470 = vsel %vm91, %v1467, %v1469
    %1471 = vrot.lane.b32.xlu0 %v1470, 64
    %v1472 = vpop.permute.xlu0 %1471
    %1473 = vrot.lane.b32.xlu0 %v1470, 32
    %v1474 = vpop.permute.xlu0 %1473
    %1475 = vrot.lane.b32.xlu0 %v1470, 96
    %v1476 = vpop.permute.xlu0 %1475
    %v1477 = vmul.f32 %v1474, %v1417
    %v1478 = vmul.f32 %v1472, %v1470
    %v1479 = vadd.f32 %v1477, %v1478
    %v1480 = vsel %vm91, %v1479, 0.0
    %v1481 = vtanh.pop %v1480
    %v1482 = vmul.f32 %v1476, %v1481
    %1483 = vst [vmem:[%s1421] sm:$0xff] %v1482
    %s1484 = scalar_lea.vmem [#allocation3], 56
    %v1485 = vld [vmem:[%s1484] sm:$0xff]
    %v1486 = vpack.c.bf16 %v1482, %v1482
    %1487 = vmatprep.subr.bf16.mxu0 0
    %1488 = vmatpush1.bf16.msra.mxu0 %v1030
    %1489 = vmatprep.subr.bf16.mxu0 0
    %1490 = vmatpush1.bf16.msra.mxu0 %v1031
    %1491 = vmatprep.subr.bf16.mxu0 0
    %1492 = vmatpush1.bf16.msra.mxu0 %v1032
    %1493 = vmatprep.subr.bf16.mxu0 0
    %1494 = vmatpush1.bf16.msra.mxu0 %v1033
    %1495 = vmatprep.subr.bf16.mxu0 0
    %1496 = vmatpush1.bf16.msra.mxu0 %v1034
    %1497 = vmatprep.subr.bf16.mxu0 0
    %1498 = vmatpush1.bf16.msra.mxu0 %v1035
    %1499 = vmatprep.subr.bf16.mxu0 0
    %1500 = vmatpush1.bf16.msra.mxu0 %v1036
    %1501 = vmatprep.subr.bf16.mxu0 0
    %1502 = vmatpush1.bf16.msra.mxu0 %v1037
    %1503 = vmatprep.subr.bf16.mxu0 0
    %1504 = vmatpush1.bf16.msra.mxu0 0
    %1505 = vmatprep.subr.bf16.mxu0 0
    %1506 = vmatpush1.bf16.msra.mxu0 0
    %1507 = vmatprep.subr.bf16.mxu0 0
    %1508 = vmatpush1.bf16.msra.mxu0 0
    %1509 = vmatprep.subr.bf16.mxu0 0
    %1510 = vmatpush1.bf16.msra.mxu0 0
    %1511 = vmatprep.subr.bf16.mxu0 0
    %1512 = vmatpush1.bf16.msra.mxu0 0
    %1513 = vmatprep.subr.bf16.mxu0 0
    %1514 = vmatpush1.bf16.msra.mxu0 0
    %1515 = vmatprep.subr.bf16.mxu0 0
    %1516 = vmatpush1.bf16.msra.mxu0 0
    %1517 = vmatprep.subr.bf16.mxu0 0
    %1518 = vmatpush1.bf16.msra.mxu0 0
    %1519 = vmatprep.mubr.bf16.mxu0 0
    %1520 = vmatmul.mubr.bf16.gmra.mrb[0].mxu0 %v1486
    %v1521 = vpop.f32.mrb[0].mxu0
    %v1522 = vadd.f32 0.0, %v1521
    %v1523 = vpop.f32.mrb[0].mxu0
    %v1524 = vpop.f32.mrb[0].mxu0
    %v1525 = vpop.f32.mrb[0].mxu0
    %1526 = vdwg.mxu0
    %v1527 = vadd.f32 %v1485, %v1522
    %v1528 = vmul.f32 %v1527, 0.5
    %v1529 = vsel %vm91, %v1527, %v1528
    %v1530 = vtanh.pop %v1529
    %v1531 = vmul.f32 %v1530, 0.5
    %v1532 = vadd.f32 %v1531, 0.5
    %v1533 = vsel %vm91, %v1530, %v1532
    %1534 = vrot.lane.b32.xlu0 %v1533, 64
    %v1535 = vpop.permute.xlu0 %1534
    %1536 = vrot.lane.b32.xlu0 %v1533, 32
    %v1537 = vpop.permute.xlu0 %1536
    %1538 = vrot.lane.b32.xlu0 %v1533, 96
    %v1539 = vpop.permute.xlu0 %1538
    %v1540 = vmul.f32 %v1537, %v1480
    %v1541 = vmul.f32 %v1535, %v1533
    %v1542 = vadd.f32 %v1540, %v1541
    %v1543 = vsel %vm91, %v1542, 0.0
    %v1544 = vtanh.pop %v1543
    %v1545 = vmul.f32 %v1539, %v1544
    %1546 = vst [vmem:[%s1484] sm:$0xff] %v1545
    %v1547 = vld [vmem:[%s1295] sm:$0xff]
    %v1548 = vld [vmem:[%s1295 + $0x8] sm:$0xff]
    %v1549 = vld [vmem:[%s1295 + $0x10] sm:$0xff]
    %v1550 = vld [vmem:[%s1295 + $0x18] sm:$0xff]
    %v1551 = vld [vmem:[%s6] sm:$0x1]
    %v1553 = vlaneseq
    %v1554 = vshrl.u32 %v1553, 7
    %v1555 = vsub.s32 0, %v1554
    %v1556 = vrot.slane %v1551, %v1555
    %v1558 = vmul.f32 %v1547, %v1556
    %v1559 = vmul.f32 %v1548, %v1556
    %v1560 = vmul.f32 %v1549, %v1556
    %v1561 = vmul.f32 %v1550, %v1556
    %1562 = vadd.xlane.f32.xlu0 %v1558
    %v1563 = vpop.xlane.xlu0 %1562
    %1564 = vadd.xlane.f32.xlu0 %v1559
    %v1565 = vpop.xlane.xlu0 %1564
    %1566 = vadd.xlane.f32.xlu0 %v1560
    %v1567 = vpop.xlane.xlu0 %1566
    %1568 = vadd.xlane.f32.xlu0 %v1561
    %v1569 = vpop.xlane.xlu0 %1568
    %s1570 = sld [smem:[#allocation4]]
    %v1571 = vstv %s1570
    %v1572 = vadd.f32 %v1563, %v1571
    %v1573 = vadd.f32 %v1565, %v1571
    %v1574 = vadd.f32 %v1567, %v1571
    %v1575 = vadd.f32 %v1569, %v1571
    %v1580 = vlaneseq
    %v1581 = vshrl.u32 %v1580, 7
    %v1582 = vsub.s32 %v88, %v1581
    %v1583 = vrot.slane %v1572, %v1582
    %v1584 = vlaneseq
    %v1585 = vshrl.u32 %v1584, 7
    %v1586 = vsub.s32 %v88, %v1585
    %v1587 = vrot.slane %v1573, %v1586
    %v1588 = vlaneseq
    %v1589 = vshrl.u32 %v1588, 7
    %v1590 = vsub.s32 %v88, %v1589
    %v1591 = vrot.slane %v1574, %v1590
    %v1592 = vlaneseq
    %v1593 = vshrl.u32 %v1592, 7
    %v1594 = vsub.s32 %v88, %v1593
    %v1595 = vrot.slane %v1575, %v1594
    %vm1596 = vcmask 1041409
    %v1597 = vsel %vm1596, %v1587, %v1583
    %vm1598 = vcmask 1042434
    %v1599 = vsel %vm1598, %v1591, %v1597
    %vm1600 = vcmask 1043459
    %v1601 = vsel %vm1600, %v1595, %v1599
    %vm1603 = vcmask 60416
    %1604 = vst.msk [vmem:[#allocation13] sm:$0xf] %vm1603, %v1601
    // Predicated region
    $region50: #{tpu_custom_call.1} parent=1 // pred_check
      _
    $region51: #{tpu_custom_call.1} parent=1 // pred_check_branch
      %1606 = sbr.rel (0) target = $region53
    $region52: #{tpu_custom_call.1} parent=1 // pred_region
      %s1608 = ssub.s32 64, 64
      %1609 = vsyncadd [#allocation7], %s1608
      %s1611 = sshll.u32 [#allocation13], 4
      %s1612 = int_to_ptr.vmem [resolvable:$true] %s1611
      %1614 = dma.vmem_to_hbm [thread:$0]  %s1612, 64, %s8, [#allocation7]
    $region53: #{tpu_custom_call.1} parent=1 // pred_fallthru
      _
    // Predicated region
    $region54: #{tpu_custom_call.1} parent=1 // pred_check
      _
    $region55: #{tpu_custom_call.1} parent=1 // pred_check_branch
      %1616 = sbr.rel (0) target = $region57
    $region56: #{tpu_custom_call.1} parent=1 // pred_region
      %1617 = dma.done [#allocation7], 64
    $region57: #{tpu_custom_call.1} parent=1 // pred_fallthru
      _
    %1618 = vsyncpa [#allocation6], 1
    %1619 = vsyncpa [#allocation9], 1
    %1620 = vsyncpa [#allocation12], 1
    %1621 = vsyncpa [#allocation7], 1

</llo_original>
